<compile_context>
chip_gen: v7x
topology: tpu7x:2x2x1
jax: 0.10.0
libtpu: 0.0.40
codegen_flags: <defaults>
</compile_context>

<pallas_src>
import functools

import jax
import jax.numpy as jnp
from jax import lax
from jax.experimental import pallas as pl
from jax.experimental.pallas import tpu as pltpu

EPS = 1e-12            # F.normalize default eps
_CHUNK = 8             # disparities per unrolled chunk (vreg-pressure friendly on v5e)


# ----------------------------------------------------------------------------- shifts
def _shift_right_zero(a, j):
    """a[..., x] -> a[..., x - j] along the last axis, zero fill for x < j (static j)."""
    if j == 0:
        return a
    w = a.shape[-1]
    zeros = jnp.zeros(a.shape[:-1] + (j,), a.dtype)
    kept = lax.slice_in_dim(a, 0, w - j, axis=a.ndim - 1)
    return jnp.concatenate([zeros, kept], axis=a.ndim - 1)


def _shift_right_roll(a, j):
    """Same displacement via the XLU rotate; wrapped lanes must be masked by the caller."""
    if j == 0:
        return a
    return pltpu.roll(a, shift=j, axis=a.ndim - 1)   # positive axis (fixes the old bug)


# ----------------------------------------------------------------------------- kernel
def _cost_volume_kernel(l_ref, r_ref, o_ref, *, num_disp, width, flattened, use_roll):
    # Blocks:  NCHW path:  l/r (1, C, TH, W),  o (1, D, TH, W)
    #          flattened:  l/r (1, C, TH*W),   o (1, D, TH*W)
    f32 = jnp.float32
    l = l_ref[0]
    r = r_ref[0]

    # F.normalize(x, p=2, dim=1):  x * rsqrt(max(sum_c x^2, eps^2))   (EUP rsqrt)
    l_scale = lax.rsqrt(jnp.maximum(
        jnp.sum(jnp.square(l), axis=0, keepdims=True, dtype=f32), EPS * EPS))
    r_scale = lax.rsqrt(jnp.maximum(
        jnp.sum(jnp.square(r), axis=0, keepdims=True, dtype=f32), EPS * EPS))

    shift = _shift_right_roll if use_roll else _shift_right_zero
    # A mask is only needed when lanes can contain wrapped / neighbouring-row data:
    #   - the roll fallback wraps around the tile,
    #   - the flattened layout packs TH rows into one lane axis.
    need_mask = use_roll or flattened
    if need_mask:
        lanes = l.shape[-1]
        xpos = lax.broadcasted_iota(
            jnp.int32, (1,) * (l.ndim - 1) + (lanes,), l.ndim - 1)
        if flattened:
            xpos = xpos % width

    def emit(idx, j_abs, r_base, rs_base, j_rel):
        # cost[j] = (sum_c l[x] * r[x-j]) * l_scale[x] * r_scale[x-j]   (0 where x < j)
        r_shift = shift(r_base, j_rel)
        corr = jnp.sum(l * r_shift, axis=0, keepdims=True, dtype=f32)
        scale = l_scale * shift(rs_base, j_rel)
        if need_mask:
            scale = jnp.where(xpos >= j_abs, scale, 0.0)
        o_ref[0, pl.ds(idx, 1)] = (corr * scale).astype(o_ref.dtype)

    n_full = num_disp // _CHUNK if num_disp > _CHUNK else 0
    rem_base = n_full * _CHUNK

    if n_full > 0:
        # Chunked loop: the U shifts inside a chunk are independent (ILP); the carried
        # base advances by U per outer step (bounded live ranges / instruction memory).
        def chunk(k, carry):
            rb, rsb = carry
            base = k * _CHUNK
            for jj in range(_CHUNK):
                emit(base + jj, base + jj, rb, rsb, jj)
            return shift(rb, _CHUNK), shift(rsb, _CHUNK)

        r_fin, rs_fin = lax.fori_loop(0, n_full, chunk, (r, r_scale))
    else:
        r_fin, rs_fin = r, r_scale

    for jj in range(num_disp - rem_base):        # static remainder / small-D path
        emit(rem_base + jj, rem_base + jj, r_fin, rs_fin, jj)


# ----------------------------------------------------------------------------- tiling
def _vmem_params():
    """(per-step tile budget, scoped-vmem limit) — generation aware, safe fallback."""
    cap = None
    try:
        cap = int(pltpu.get_tpu_info().vmem_capacity_bytes)
    except Exception:
        cap = None
    if cap is not None and cap > (96 << 20):     # v5e / v6e class: 128 MiB VMEM
        return 20 << 20, 64 << 20
    return 12 << 20, 40 << 20                    # v7x class (64 MiB) or unknown: stay safe


def _choose_rows(H, W, per_row, budget, flattened, n_batch):
    """Largest row tile TH that divides H, satisfies the (8,128) block constraint and
    fits the per-step VMEM budget; falls back to the smallest legal tile / full H."""
    def legal(th):
        if th == H:
            return True            # block dims equal to the full array dims are legal
        if H % th:
            return False
        return (th * W) % 128 == 0 if flattened else th % 8 == 0

    valid = [th for th in range(1, H + 1) if legal(th)]
    fitting = [th for th in valid if th * per_row <= budget]
    th = max(fitting) if fitting else min(valid)
    # Megacore / v7x: make sure there are >= 2 grid steps when it is free to do so.
    if n_batch * (H // th) < 2:
        smaller = [t for t in valid if t < th]
        if smaller:
            th = max(smaller)
    return th


# ----------------------------------------------------------------------------- wrapper
def _cost_volume_level(left, right, num_disp, shift_impl):
    N, C, H, W = left.shape
    if num_disp > W:
        # torch.diagonal(offset=-j) + stack would also fail for j >= W.
        raise ValueError(f"num_disp={num_disp} exceeds feature width W={W}")
    itemsize = jnp.dtype(left.dtype).itemsize
    budget, vmem_limit = _vmem_params()

    # Rough per-H-row VMEM bytes per grid step: double-buffered blocks + working set
    # (l/r values, a few in-flight shift/product temporaries, scales).
    per_row = (itemsize * (4 * C * W + 2 * num_disp * W)
               + 4 * (2 * C * W)
               + 4 * (4 * C * W + 8 * W))

    flattened = W < 128              # lane-dense layout for coarse pyramid levels
    th = _choose_rows(H, W, per_row, budget, flattened, N)
    kernel = functools.partial(_cost_volume_kernel, num_disp=num_disp, width=W,
                               flattened=flattened, use_roll=(shift_impl == "roll"))

    if flattened:
        lf, rf = left.reshape(N, C, H * W), right.reshape(N, C, H * W)
        blk_in, blk_out = (1, C, th * W), (1, num_disp, th * W)
        imap = lambda n, h: (n, 0, h)
        out_shape = jax.ShapeDtypeStruct((N, num_disp, H * W), left.dtype)
    else:
        lf, rf = left, right
        blk_in, blk_out = (1, C, th, W), (1, num_disp, th, W)
        imap = lambda n, h: (n, 0, h, 0)
        out_shape = jax.ShapeDtypeStruct((N, num_disp, H, W), left.dtype)

    out = pl.pallas_call(
        kernel,
        out_shape=out_shape,
        grid_spec=pltpu.PrefetchScalarGridSpec(
            num_scalar_prefetch=0,
            grid=(N, H // th),
            in_specs=[pl.BlockSpec(blk_in, imap), pl.BlockSpec(blk_in, imap)],
            out_specs=pl.BlockSpec(blk_out, imap)),
        compiler_params=pltpu.CompilerParams(
            dimension_semantics=("parallel", "parallel"),
            vmem_limit_bytes=vmem_limit),
    )(lf, rf)
    return out.reshape(N, num_disp, H, W) if flattened else out


_shift_impl_cache = {"impl": "concat"}


def cost_volume_level(left, right, num_disp):
    """Zero-fill lane shift primary; pltpu.roll(+mask) fallback for Mosaic versions
    without unaligned minor-dim concatenation support."""
    impl = _shift_impl_cache["impl"]
    try:
        return jax.block_until_ready(_cost_volume_level(left, right, num_disp, impl))
    except Exception:            # noqa: BLE001 - retry once with the rotate-based shift
        if impl == "roll":
            raise
        _shift_impl_cache["impl"] = "roll"
        return _cost_volume_level(left, right, num_disp, "roll")


def body_fst(left_features, right_features, max_disparity, kernels=None):
    """Pallas equivalent of BodyFst.forward (`kernels` is unused, as in the torch code)."""
    del kernels
    max_disparity = min(max_disparity, left_features[0].shape[-1])
    cost_volumes = []
    for i, (lf, rf) in enumerate(zip(left_features, right_features)):
        num_disp = max_disparity // (2 ** i)
        if num_disp == 0:        # deep level: torch would fail on an empty stack
            n, _, h, w = lf.shape
            cost_volumes.append(jnp.zeros((n, 0, h, w), lf.dtype))
            continue
        cost_volumes.append(cost_volume_level(lf, rf, num_disp))
    return cost_volumes


# ----------------------------------------------------------------------------- reference
def _ref_body_fst(left_features, right_features, max_disparity):
    """Pure-JAX reference mirroring the torch code, for verification."""
    max_disparity = min(max_disparity, left_features[0].shape[-1])
    outs = []
    for i, (lf, rf) in enumerate(zip(left_features, right_features)):
        ln = lf / jnp.maximum(jnp.sqrt(jnp.sum(lf * lf, axis=1, keepdims=True)), EPS)
        rn = rf / jnp.maximum(jnp.sqrt(jnp.sum(rf * rf, axis=1, keepdims=True)), EPS)
        dot = jnp.einsum("nchx,nchy->nhxy", ln, rn)
        costs = []
        for j in range(max_disparity // (2 ** i)):
            diag = jnp.diagonal(dot, offset=-j, axis1=-2, axis2=-1)  # (N, H, W-j)
            costs.append(jnp.pad(diag, ((0, 0), (0, 0), (j, 0))))
        outs.append(jnp.stack(costs, axis=1))
    return outs


if __name__ == "__main__":
    key = jax.random.PRNGKey(0)
    # Small stereo feature pyramid (NCHW, stride-2 levels); level 0 exercises the
    # wide-W (>=128) path + the chunked disparity loop, levels 1-2 the flattened path.
    shapes = [(2, 4, 8, 128), (2, 8, 4, 64), (2, 16, 2, 32)]
    keys = jax.random.split(key, 2 * len(shapes))
    left_features = [
        jax.random.normal(keys[2 * i], s, jnp.float32) for i, s in enumerate(shapes)
    ]
    right_features = [
        jax.random.normal(keys[2 * i + 1], s, jnp.float32) for i, s in enumerate(shapes)
    ]
    max_disparity = 16   # -> D = [16, 8, 4] per level

    outs = body_fst(left_features, right_features, max_disparity)
    outs = jax.block_until_ready(outs)

    refs = _ref_body_fst(left_features, right_features, max_disparity)
    for o, r in zip(outs, refs):
        assert o.shape == r.shape, (o.shape, r.shape)
        err = float(jnp.max(jnp.abs(o - r)))
        assert jnp.allclose(o, r, atol=1e-4, rtol=1e-4), err

    print("KERNEL_OK")
</pallas_src>

<mosaic_0001>
module attributes {stable_mosaic.version = 11 : i64} {
  func.func @_cost_volume_kernel(%arg0: i32, %arg1: i32, %arg2: memref<1x4x8x128xf32, #tpu.memory_space<vmem>>, %arg3: memref<1x4x8x128xf32, #tpu.memory_space<vmem>>, %arg4: memref<1x16x8x128xf32, #tpu.memory_space<vmem>>) attributes {dimension_semantics = [#tpu.dimension_semantics<parallel>, #tpu.dimension_semantics<parallel>], iteration_bounds = array<i64: 2, 1>, scalar_prefetch = 0 : i64, scratch_operands = 0 : i64, tpu.core_type = #tpu.core_type<tc>, window_params = [{transform_indices = @transform_0, window_bounds = array<i64: 1, 4, 8, 128>}, {transform_indices = @transform_1, window_bounds = array<i64: 1, 4, 8, 128>}, {transform_indices = @transform_2, window_bounds = array<i64: 1, 16, 8, 128>}]} {
    %c0 = arith.constant 0 : index
    %c0_0 = arith.constant 0 : index
    %c0_1 = arith.constant 0 : index
    %c0_2 = arith.constant 0 : index
    %0 = vector.load %arg2[%c0, %c0_0, %c0_1, %c0_2] : memref<1x4x8x128xf32, #tpu.memory_space<vmem>>, vector<1x4x8x128xf32>
    %1 = vector.shape_cast %0 : vector<1x4x8x128xf32> to vector<4x8x128xf32>
    %c0_3 = arith.constant 0 : index
    %c0_4 = arith.constant 0 : index
    %c0_5 = arith.constant 0 : index
    %c0_6 = arith.constant 0 : index
    %2 = vector.load %arg3[%c0_3, %c0_4, %c0_5, %c0_6] : memref<1x4x8x128xf32, #tpu.memory_space<vmem>>, vector<1x4x8x128xf32>
    %3 = vector.shape_cast %2 : vector<1x4x8x128xf32> to vector<4x8x128xf32>
    %4 = arith.mulf %1, %1 : vector<4x8x128xf32>
    %cst = arith.constant dense<0.000000e+00> : vector<8x128xf32>
    %5 = vector.multi_reduction <add>, %4, %cst [0] : vector<4x8x128xf32> to vector<8x128xf32>
    %6 = vector.shape_cast %5 : vector<8x128xf32> to vector<1x8x128xf32>
    %cst_7 = arith.constant 1.000000e-24 : f32
    %7 = vector.broadcast %cst_7 : f32 to vector<1x8x128xf32>
    %8 = arith.maximumf %6, %7 : vector<1x8x128xf32>
    %9 = math.rsqrt %8 : vector<1x8x128xf32>
    %10 = arith.mulf %3, %3 : vector<4x8x128xf32>
    %cst_8 = arith.constant dense<0.000000e+00> : vector<8x128xf32>
    %11 = vector.multi_reduction <add>, %10, %cst_8 [0] : vector<4x8x128xf32> to vector<8x128xf32>
    %12 = vector.shape_cast %11 : vector<8x128xf32> to vector<1x8x128xf32>
    %cst_9 = arith.constant 1.000000e-24 : f32
    %13 = vector.broadcast %cst_9 : f32 to vector<1x8x128xf32>
    %14 = arith.maximumf %12, %13 : vector<1x8x128xf32>
    %15 = math.rsqrt %14 : vector<1x8x128xf32>
    %c0_i32 = arith.constant 0 : i32
    %c2_i32 = arith.constant 2 : i32
    %16 = arith.addi %c0_i32, %c2_i32 : i32
    %c1_i32 = arith.constant 1 : i32
    %17:2 = scf.for %arg5 = %c0_i32 to %16 step %c1_i32 iter_args(%arg6 = %3, %arg7 = %15) -> (vector<4x8x128xf32>, vector<1x8x128xf32>)  : i32 {
      %c8_i32 = arith.constant 8 : i32
      %18 = arith.muli %arg5, %c8_i32 : i32
      %c0_i32_11 = arith.constant 0 : i32
      %19 = arith.addi %18, %c0_i32_11 : i32
      %20 = arith.mulf %1, %arg6 : vector<4x8x128xf32>
      %cst_12 = arith.constant dense<0.000000e+00> : vector<8x128xf32>
      %21 = vector.multi_reduction <add>, %20, %cst_12 [0] : vector<4x8x128xf32> to vector<8x128xf32>
      %22 = vector.shape_cast %21 : vector<8x128xf32> to vector<1x8x128xf32>
      %23 = arith.mulf %9, %arg7 : vector<1x8x128xf32>
      %24 = arith.mulf %22, %23 : vector<1x8x128xf32>
      %c0_13 = arith.constant 0 : index
      %25 = arith.index_cast %19 : i32 to index
      %c0_14 = arith.constant 0 : index
      %c0_15 = arith.constant 0 : index
      %26 = vector.load %arg4[%c0_13, %25, %c0_14, %c0_15] : memref<1x16x8x128xf32, #tpu.memory_space<vmem>>, vector<1x1x8x128xf32>
      %27 = vector.shape_cast %26 : vector<1x1x8x128xf32> to vector<1x8x128xf32>
      %28 = vector.shape_cast %24 : vector<1x8x128xf32> to vector<1x1x8x128xf32>
      tpu.vector_store %arg4[%c0_13, %25, %c0_14, %c0_15], %28 {strides = array<i32>} : memref<1x16x8x128xf32, #tpu.memory_space<vmem>>, vector<1x1x8x128xf32>,
      %c1_i32_16 = arith.constant 1 : i32
      %29 = arith.addi %18, %c1_i32_16 : i32
      %cst_17 = arith.constant 0.000000e+00 : f32
      %30 = vector.broadcast %cst_17 : f32 to vector<4x8x1xf32>
      %31 = vector.extract_strided_slice %arg6 {offsets = [0, 0, 0], sizes = [4, 8, 127], strides = [1, 1, 1]} : vector<4x8x128xf32> to vector<4x8x127xf32>
      %32 = tpu.concatenate %30, %31 in 2 : vector<4x8x1xf32>, vector<4x8x127xf32> -> vector<4x8x128xf32>
      %33 = arith.mulf %1, %32 : vector<4x8x128xf32>
      %cst_18 = arith.constant dense<0.000000e+00> : vector<8x128xf32>
      %34 = vector.multi_reduction <add>, %33, %cst_18 [0] : vector<4x8x128xf32> to vector<8x128xf32>
      %35 = vector.shape_cast %34 : vector<8x128xf32> to vector<1x8x128xf32>
      %cst_19 = arith.constant 0.000000e+00 : f32
      %36 = vector.broadcast %cst_19 : f32 to vector<1x8x1xf32>
      %37 = vector.extract_strided_slice %arg7 {offsets = [0, 0, 0], sizes = [1, 8, 127], strides = [1, 1, 1]} : vector<1x8x128xf32> to vector<1x8x127xf32>
      %38 = tpu.concatenate %36, %37 in 2 : vector<1x8x1xf32>, vector<1x8x127xf32> -> vector<1x8x128xf32>
      %39 = arith.mulf %9, %38 : vector<1x8x128xf32>
      %40 = arith.mulf %35, %39 : vector<1x8x128xf32>
      %c0_20 = arith.constant 0 : index
      %41 = arith.index_cast %29 : i32 to index
      %c0_21 = arith.constant 0 : index
      %c0_22 = arith.constant 0 : index
      %42 = vector.load %arg4[%c0_20, %41, %c0_21, %c0_22] : memref<1x16x8x128xf32, #tpu.memory_space<vmem>>, vector<1x1x8x128xf32>
      %43 = vector.shape_cast %42 : vector<1x1x8x128xf32> to vector<1x8x128xf32>
      %44 = vector.shape_cast %40 : vector<1x8x128xf32> to vector<1x1x8x128xf32>
      tpu.vector_store %arg4[%c0_20, %41, %c0_21, %c0_22], %44 {strides = array<i32>} : memref<1x16x8x128xf32, #tpu.memory_space<vmem>>, vector<1x1x8x128xf32>,
      %c2_i32_23 = arith.constant 2 : i32
      %45 = arith.addi %18, %c2_i32_23 : i32
      %cst_24 = arith.constant 0.000000e+00 : f32
      %46 = vector.broadcast %cst_24 : f32 to vector<4x8x2xf32>
      %47 = vector.extract_strided_slice %arg6 {offsets = [0, 0, 0], sizes = [4, 8, 126], strides = [1, 1, 1]} : vector<4x8x128xf32> to vector<4x8x126xf32>
      %48 = tpu.concatenate %46, %47 in 2 : vector<4x8x2xf32>, vector<4x8x126xf32> -> vector<4x8x128xf32>
      %49 = arith.mulf %1, %48 : vector<4x8x128xf32>
      %cst_25 = arith.constant dense<0.000000e+00> : vector<8x128xf32>
      %50 = vector.multi_reduction <add>, %49, %cst_25 [0] : vector<4x8x128xf32> to vector<8x128xf32>
      %51 = vector.shape_cast %50 : vector<8x128xf32> to vector<1x8x128xf32>
      %cst_26 = arith.constant 0.000000e+00 : f32
      %52 = vector.broadcast %cst_26 : f32 to vector<1x8x2xf32>
      %53 = vector.extract_strided_slice %arg7 {offsets = [0, 0, 0], sizes = [1, 8, 126], strides = [1, 1, 1]} : vector<1x8x128xf32> to vector<1x8x126xf32>
      %54 = tpu.concatenate %52, %53 in 2 : vector<1x8x2xf32>, vector<1x8x126xf32> -> vector<1x8x128xf32>
      %55 = arith.mulf %9, %54 : vector<1x8x128xf32>
      %56 = arith.mulf %51, %55 : vector<1x8x128xf32>
      %c0_27 = arith.constant 0 : index
      %57 = arith.index_cast %45 : i32 to index
      %c0_28 = arith.constant 0 : index
      %c0_29 = arith.constant 0 : index
      %58 = vector.load %arg4[%c0_27, %57, %c0_28, %c0_29] : memref<1x16x8x128xf32, #tpu.memory_space<vmem>>, vector<1x1x8x128xf32>
      %59 = vector.shape_cast %58 : vector<1x1x8x128xf32> to vector<1x8x128xf32>
      %60 = vector.shape_cast %56 : vector<1x8x128xf32> to vector<1x1x8x128xf32>
      tpu.vector_store %arg4[%c0_27, %57, %c0_28, %c0_29], %60 {strides = array<i32>} : memref<1x16x8x128xf32, #tpu.memory_space<vmem>>, vector<1x1x8x128xf32>,
      %c3_i32 = arith.constant 3 : i32
      %61 = arith.addi %18, %c3_i32 : i32
      %cst_30 = arith.constant 0.000000e+00 : f32
      %62 = vector.broadcast %cst_30 : f32 to vector<4x8x3xf32>
      %63 = vector.extract_strided_slice %arg6 {offsets = [0, 0, 0], sizes = [4, 8, 125], strides = [1, 1, 1]} : vector<4x8x128xf32> to vector<4x8x125xf32>
      %64 = tpu.concatenate %62, %63 in 2 : vector<4x8x3xf32>, vector<4x8x125xf32> -> vector<4x8x128xf32>
      %65 = arith.mulf %1, %64 : vector<4x8x128xf32>
      %cst_31 = arith.constant dense<0.000000e+00> : vector<8x128xf32>
      %66 = vector.multi_reduction <add>, %65, %cst_31 [0] : vector<4x8x128xf32> to vector<8x128xf32>
      %67 = vector.shape_cast %66 : vector<8x128xf32> to vector<1x8x128xf32>
      %cst_32 = arith.constant 0.000000e+00 : f32
      %68 = vector.broadcast %cst_32 : f32 to vector<1x8x3xf32>
      %69 = vector.extract_strided_slice %arg7 {offsets = [0, 0, 0], sizes = [1, 8, 125], strides = [1, 1, 1]} : vector<1x8x128xf32> to vector<1x8x125xf32>
      %70 = tpu.concatenate %68, %69 in 2 : vector<1x8x3xf32>, vector<1x8x125xf32> -> vector<1x8x128xf32>
      %71 = arith.mulf %9, %70 : vector<1x8x128xf32>
      %72 = arith.mulf %67, %71 : vector<1x8x128xf32>
      %c0_33 = arith.constant 0 : index
      %73 = arith.index_cast %61 : i32 to index
      %c0_34 = arith.constant 0 : index
      %c0_35 = arith.constant 0 : index
      %74 = vector.load %arg4[%c0_33, %73, %c0_34, %c0_35] : memref<1x16x8x128xf32, #tpu.memory_space<vmem>>, vector<1x1x8x128xf32>
      %75 = vector.shape_cast %74 : vector<1x1x8x128xf32> to vector<1x8x128xf32>
      %76 = vector.shape_cast %72 : vector<1x8x128xf32> to vector<1x1x8x128xf32>
      tpu.vector_store %arg4[%c0_33, %73, %c0_34, %c0_35], %76 {strides = array<i32>} : memref<1x16x8x128xf32, #tpu.memory_space<vmem>>, vector<1x1x8x128xf32>,
      %c4_i32 = arith.constant 4 : i32
      %77 = arith.addi %18, %c4_i32 : i32
      %cst_36 = arith.constant 0.000000e+00 : f32
      %78 = vector.broadcast %cst_36 : f32 to vector<4x8x4xf32>
      %79 = vector.extract_strided_slice %arg6 {offsets = [0, 0, 0], sizes = [4, 8, 124], strides = [1, 1, 1]} : vector<4x8x128xf32> to vector<4x8x124xf32>
      %80 = tpu.concatenate %78, %79 in 2 : vector<4x8x4xf32>, vector<4x8x124xf32> -> vector<4x8x128xf32>
      %81 = arith.mulf %1, %80 : vector<4x8x128xf32>
      %cst_37 = arith.constant dense<0.000000e+00> : vector<8x128xf32>
      %82 = vector.multi_reduction <add>, %81, %cst_37 [0] : vector<4x8x128xf32> to vector<8x128xf32>
      %83 = vector.shape_cast %82 : vector<8x128xf32> to vector<1x8x128xf32>
      %cst_38 = arith.constant 0.000000e+00 : f32
      %84 = vector.broadcast %cst_38 : f32 to vector<1x8x4xf32>
      %85 = vector.extract_strided_slice %arg7 {offsets = [0, 0, 0], sizes = [1, 8, 124], strides = [1, 1, 1]} : vector<1x8x128xf32> to vector<1x8x124xf32>
      %86 = tpu.concatenate %84, %85 in 2 : vector<1x8x4xf32>, vector<1x8x124xf32> -> vector<1x8x128xf32>
      %87 = arith.mulf %9, %86 : vector<1x8x128xf32>
      %88 = arith.mulf %83, %87 : vector<1x8x128xf32>
      %c0_39 = arith.constant 0 : index
      %89 = arith.index_cast %77 : i32 to index
      %c0_40 = arith.constant 0 : index
      %c0_41 = arith.constant 0 : index
      %90 = vector.load %arg4[%c0_39, %89, %c0_40, %c0_41] : memref<1x16x8x128xf32, #tpu.memory_space<vmem>>, vector<1x1x8x128xf32>
      %91 = vector.shape_cast %90 : vector<1x1x8x128xf32> to vector<1x8x128xf32>
      %92 = vector.shape_cast %88 : vector<1x8x128xf32> to vector<1x1x8x128xf32>
      tpu.vector_store %arg4[%c0_39, %89, %c0_40, %c0_41], %92 {strides = array<i32>} : memref<1x16x8x128xf32, #tpu.memory_space<vmem>>, vector<1x1x8x128xf32>,
      %c5_i32 = arith.constant 5 : i32
      %93 = arith.addi %18, %c5_i32 : i32
      %cst_42 = arith.constant 0.000000e+00 : f32
      %94 = vector.broadcast %cst_42 : f32 to vector<4x8x5xf32>
      %95 = vector.extract_strided_slice %arg6 {offsets = [0, 0, 0], sizes = [4, 8, 123], strides = [1, 1, 1]} : vector<4x8x128xf32> to vector<4x8x123xf32>
      %96 = tpu.concatenate %94, %95 in 2 : vector<4x8x5xf32>, vector<4x8x123xf32> -> vector<4x8x128xf32>
      %97 = arith.mulf %1, %96 : vector<4x8x128xf32>
      %cst_43 = arith.constant dense<0.000000e+00> : vector<8x128xf32>
      %98 = vector.multi_reduction <add>, %97, %cst_43 [0] : vector<4x8x128xf32> to vector<8x128xf32>
      %99 = vector.shape_cast %98 : vector<8x128xf32> to vector<1x8x128xf32>
      %cst_44 = arith.constant 0.000000e+00 : f32
      %100 = vector.broadcast %cst_44 : f32 to vector<1x8x5xf32>
      %101 = vector.extract_strided_slice %arg7 {offsets = [0, 0, 0], sizes = [1, 8, 123], strides = [1, 1, 1]} : vector<1x8x128xf32> to vector<1x8x123xf32>
      %102 = tpu.concatenate %100, %101 in 2 : vector<1x8x5xf32>, vector<1x8x123xf32> -> vector<1x8x128xf32>
      %103 = arith.mulf %9, %102 : vector<1x8x128xf32>
      %104 = arith.mulf %99, %103 : vector<1x8x128xf32>
      %c0_45 = arith.constant 0 : index
      %105 = arith.index_cast %93 : i32 to index
      %c0_46 = arith.constant 0 : index
      %c0_47 = arith.constant 0 : index
      %106 = vector.load %arg4[%c0_45, %105, %c0_46, %c0_47] : memref<1x16x8x128xf32, #tpu.memory_space<vmem>>, vector<1x1x8x128xf32>
      %107 = vector.shape_cast %106 : vector<1x1x8x128xf32> to vector<1x8x128xf32>
      %108 = vector.shape_cast %104 : vector<1x8x128xf32> to vector<1x1x8x128xf32>
      tpu.vector_store %arg4[%c0_45, %105, %c0_46, %c0_47], %108 {strides = array<i32>} : memref<1x16x8x128xf32, #tpu.memory_space<vmem>>, vector<1x1x8x128xf32>,
      %c6_i32 = arith.constant 6 : i32
      %109 = arith.addi %18, %c6_i32 : i32
      %cst_48 = arith.constant 0.000000e+00 : f32
      %110 = vector.broadcast %cst_48 : f32 to vector<4x8x6xf32>
      %111 = vector.extract_strided_slice %arg6 {offsets = [0, 0, 0], sizes = [4, 8, 122], strides = [1, 1, 1]} : vector<4x8x128xf32> to vector<4x8x122xf32>
      %112 = tpu.concatenate %110, %111 in 2 : vector<4x8x6xf32>, vector<4x8x122xf32> -> vector<4x8x128xf32>
      %113 = arith.mulf %1, %112 : vector<4x8x128xf32>
      %cst_49 = arith.constant dense<0.000000e+00> : vector<8x128xf32>
      %114 = vector.multi_reduction <add>, %113, %cst_49 [0] : vector<4x8x128xf32> to vector<8x128xf32>
      %115 = vector.shape_cast %114 : vector<8x128xf32> to vector<1x8x128xf32>
      %cst_50 = arith.constant 0.000000e+00 : f32
      %116 = vector.broadcast %cst_50 : f32 to vector<1x8x6xf32>
      %117 = vector.extract_strided_slice %arg7 {offsets = [0, 0, 0], sizes = [1, 8, 122], strides = [1, 1, 1]} : vector<1x8x128xf32> to vector<1x8x122xf32>
      %118 = tpu.concatenate %116, %117 in 2 : vector<1x8x6xf32>, vector<1x8x122xf32> -> vector<1x8x128xf32>
      %119 = arith.mulf %9, %118 : vector<1x8x128xf32>
      %120 = arith.mulf %115, %119 : vector<1x8x128xf32>
      %c0_51 = arith.constant 0 : index
      %121 = arith.index_cast %109 : i32 to index
      %c0_52 = arith.constant 0 : index
      %c0_53 = arith.constant 0 : index
      %122 = vector.load %arg4[%c0_51, %121, %c0_52, %c0_53] : memref<1x16x8x128xf32, #tpu.memory_space<vmem>>, vector<1x1x8x128xf32>
      %123 = vector.shape_cast %122 : vector<1x1x8x128xf32> to vector<1x8x128xf32>
      %124 = vector.shape_cast %120 : vector<1x8x128xf32> to vector<1x1x8x128xf32>
      tpu.vector_store %arg4[%c0_51, %121, %c0_52, %c0_53], %124 {strides = array<i32>} : memref<1x16x8x128xf32, #tpu.memory_space<vmem>>, vector<1x1x8x128xf32>,
      %c7_i32 = arith.constant 7 : i32
      %125 = arith.addi %18, %c7_i32 : i32
      %cst_54 = arith.constant 0.000000e+00 : f32
      %126 = vector.broadcast %cst_54 : f32 to vector<4x8x7xf32>
      %127 = vector.extract_strided_slice %arg6 {offsets = [0, 0, 0], sizes = [4, 8, 121], strides = [1, 1, 1]} : vector<4x8x128xf32> to vector<4x8x121xf32>
      %128 = tpu.concatenate %126, %127 in 2 : vector<4x8x7xf32>, vector<4x8x121xf32> -> vector<4x8x128xf32>
      %129 = arith.mulf %1, %128 : vector<4x8x128xf32>
      %cst_55 = arith.constant dense<0.000000e+00> : vector<8x128xf32>
      %130 = vector.multi_reduction <add>, %129, %cst_55 [0] : vector<4x8x128xf32> to vector<8x128xf32>
      %131 = vector.shape_cast %130 : vector<8x128xf32> to vector<1x8x128xf32>
      %cst_56 = arith.constant 0.000000e+00 : f32
      %132 = vector.broadcast %cst_56 : f32 to vector<1x8x7xf32>
      %133 = vector.extract_strided_slice %arg7 {offsets = [0, 0, 0], sizes = [1, 8, 121], strides = [1, 1, 1]} : vector<1x8x128xf32> to vector<1x8x121xf32>
      %134 = tpu.concatenate %132, %133 in 2 : vector<1x8x7xf32>, vector<1x8x121xf32> -> vector<1x8x128xf32>
      %135 = arith.mulf %9, %134 : vector<1x8x128xf32>
      %136 = arith.mulf %131, %135 : vector<1x8x128xf32>
      %c0_57 = arith.constant 0 : index
      %137 = arith.index_cast %125 : i32 to index
      %c0_58 = arith.constant 0 : index
      %c0_59 = arith.constant 0 : index
      %138 = vector.load %arg4[%c0_57, %137, %c0_58, %c0_59] : memref<1x16x8x128xf32, #tpu.memory_space<vmem>>, vector<1x1x8x128xf32>
      %139 = vector.shape_cast %138 : vector<1x1x8x128xf32> to vector<1x8x128xf32>
      %140 = vector.shape_cast %136 : vector<1x8x128xf32> to vector<1x1x8x128xf32>
      tpu.vector_store %arg4[%c0_57, %137, %c0_58, %c0_59], %140 {strides = array<i32>} : memref<1x16x8x128xf32, #tpu.memory_space<vmem>>, vector<1x1x8x128xf32>,
      %cst_60 = arith.constant 0.000000e+00 : f32
      %141 = vector.broadcast %cst_60 : f32 to vector<4x8x8xf32>
      %142 = vector.extract_strided_slice %arg6 {offsets = [0, 0, 0], sizes = [4, 8, 120], strides = [1, 1, 1]} : vector<4x8x128xf32> to vector<4x8x120xf32>
      %143 = tpu.concatenate %141, %142 in 2 : vector<4x8x8xf32>, vector<4x8x120xf32> -> vector<4x8x128xf32>
      %cst_61 = arith.constant 0.000000e+00 : f32
      %144 = vector.broadcast %cst_61 : f32 to vector<1x8x8xf32>
      %145 = vector.extract_strided_slice %arg7 {offsets = [0, 0, 0], sizes = [1, 8, 120], strides = [1, 1, 1]} : vector<1x8x128xf32> to vector<1x8x120xf32>
      %146 = tpu.concatenate %144, %145 in 2 : vector<1x8x8xf32>, vector<1x8x120xf32> -> vector<1x8x128xf32>
      scf.yield %143, %146 : vector<4x8x128xf32>, vector<1x8x128xf32>
    }
    %c2_i32_10 = arith.constant 2 : i32
    return
  }
  func.func @transform_0(%arg0: i32, %arg1: i32) -> (i32, i32, i32, i32) {
    %c0_i32 = arith.constant 0 : i32
    %c0_i32_0 = arith.constant 0 : i32
    %c0_i32_1 = arith.constant 0 : i32
    return %arg0, %c0_i32, %arg1, %c0_i32_0 : i32, i32, i32, i32
  }
  func.func @transform_1(%arg0: i32, %arg1: i32) -> (i32, i32, i32, i32) {
    %c0_i32 = arith.constant 0 : i32
    %c0_i32_0 = arith.constant 0 : i32
    %c0_i32_1 = arith.constant 0 : i32
    return %arg0, %c0_i32, %arg1, %c0_i32_0 : i32, i32, i32, i32
  }
  func.func @transform_2(%arg0: i32, %arg1: i32) -> (i32, i32, i32, i32) {
    %c0_i32 = arith.constant 0 : i32
    %c0_i32_0 = arith.constant 0 : i32
    %c0_i32_1 = arith.constant 0 : i32
    return %arg0, %c0_i32, %arg1, %c0_i32_0 : i32, i32, i32, i32
  }
}

module attributes {stable_mosaic.version = 11 : i64} {
  func.func @_cost_volume_kernel(%arg0: i32, %arg1: i32, %arg2: memref<1x4x8x128xf32, #tpu.memory_space<vmem>>, %arg3: memref<1x4x8x128xf32, #tpu.memory_space<vmem>>, %arg4: memref<1x16x8x128xf32, #tpu.memory_space<vmem>>) attributes {dimension_semantics = [#tpu.dimension_semantics<parallel>, #tpu.dimension_semantics<parallel>], iteration_bounds = array<i64: 2, 1>, scalar_prefetch = 0 : i64, scratch_operands = 0 : i64, tpu.core_type = #tpu.core_type<tc>, window_params = [{transform_indices = @transform_0, window_bounds = array<i64: 1, 4, 8, 128>}, {transform_indices = @transform_1, window_bounds = array<i64: 1, 4, 8, 128>}, {transform_indices = @transform_2, window_bounds = array<i64: 1, 16, 8, 128>}]} {
    %c0 = arith.constant 0 : index
    %c0_0 = arith.constant 0 : index
    %c0_1 = arith.constant 0 : index
    %c0_2 = arith.constant 0 : index
    %0 = vector.load %arg2[%c0, %c0_0, %c0_1, %c0_2] : memref<1x4x8x128xf32, #tpu.memory_space<vmem>>, vector<1x4x8x128xf32>
    %1 = vector.shape_cast %0 : vector<1x4x8x128xf32> to vector<4x8x128xf32>
    %c0_3 = arith.constant 0 : index
    %c0_4 = arith.constant 0 : index
    %c0_5 = arith.constant 0 : index
    %c0_6 = arith.constant 0 : index
    %2 = vector.load %arg3[%c0_3, %c0_4, %c0_5, %c0_6] : memref<1x4x8x128xf32, #tpu.memory_space<vmem>>, vector<1x4x8x128xf32>
    %3 = vector.shape_cast %2 : vector<1x4x8x128xf32> to vector<4x8x128xf32>
    %4 = arith.mulf %1, %1 : vector<4x8x128xf32>
    %cst = arith.constant dense<0.000000e+00> : vector<8x128xf32>
    %5 = vector.multi_reduction <add>, %4, %cst [0] : vector<4x8x128xf32> to vector<8x128xf32>
    %6 = vector.shape_cast %5 : vector<8x128xf32> to vector<1x8x128xf32>
    %cst_7 = arith.constant 1.000000e-24 : f32
    %7 = vector.broadcast %cst_7 : f32 to vector<1x8x128xf32>
    %8 = arith.maximumf %6, %7 : vector<1x8x128xf32>
    %9 = math.rsqrt %8 : vector<1x8x128xf32>
    %10 = arith.mulf %3, %3 : vector<4x8x128xf32>
    %cst_8 = arith.constant dense<0.000000e+00> : vector<8x128xf32>
    %11 = vector.multi_reduction <add>, %10, %cst_8 [0] : vector<4x8x128xf32> to vector<8x128xf32>
    %12 = vector.shape_cast %11 : vector<8x128xf32> to vector<1x8x128xf32>
    %cst_9 = arith.constant 1.000000e-24 : f32
    %13 = vector.broadcast %cst_9 : f32 to vector<1x8x128xf32>
    %14 = arith.maximumf %12, %13 : vector<1x8x128xf32>
    %15 = math.rsqrt %14 : vector<1x8x128xf32>
    %16 = tpu.iota {dimensions = array<i32: 2>} : vector<1x1x128xi32>
    %c0_i32 = arith.constant 0 : i32
    %c2_i32 = arith.constant 2 : i32
    %17 = arith.addi %c0_i32, %c2_i32 : i32
    %c1_i32 = arith.constant 1 : i32
    %18:2 = scf.for %arg5 = %c0_i32 to %17 step %c1_i32 iter_args(%arg6 = %3, %arg7 = %15) -> (vector<4x8x128xf32>, vector<1x8x128xf32>)  : i32 {
      %c8_i32 = arith.constant 8 : i32
      %19 = arith.muli %arg5, %c8_i32 : i32
      %c0_i32_11 = arith.constant 0 : i32
      %20 = arith.addi %19, %c0_i32_11 : i32
      %c0_i32_12 = arith.constant 0 : i32
      %21 = arith.addi %19, %c0_i32_12 : i32
      %22 = arith.mulf %1, %arg6 : vector<4x8x128xf32>
      %cst_13 = arith.constant dense<0.000000e+00> : vector<8x128xf32>
      %23 = vector.multi_reduction <add>, %22, %cst_13 [0] : vector<4x8x128xf32> to vector<8x128xf32>
      %24 = vector.shape_cast %23 : vector<8x128xf32> to vector<1x8x128xf32>
      %25 = arith.mulf %9, %arg7 : vector<1x8x128xf32>
      %26 = vector.broadcast %21 : i32 to vector<1x1x128xi32>
      %27 = arith.cmpi sge, %16, %26 : vector<1x1x128xi32>
      %cst_14 = arith.constant 0.000000e+00 : f32
      %28 = vector.shape_cast %27 : vector<1x1x128xi1> to vector<1x1x128xi1>
      %29 = vector.broadcast %28 : vector<1x1x128xi1> to vector<1x8x128xi1>
      %30 = vector.broadcast %cst_14 : f32 to vector<1x8x128xf32>
      %31 = arith.select %29, %25, %30 : vector<1x8x128xi1>, vector<1x8x128xf32>
      %32 = arith.mulf %24, %31 : vector<1x8x128xf32>
      %c0_15 = arith.constant 0 : index
      %33 = arith.index_cast %20 : i32 to index
      %c0_16 = arith.constant 0 : index
      %c0_17 = arith.constant 0 : index
      %34 = vector.load %arg4[%c0_15, %33, %c0_16, %c0_17] : memref<1x16x8x128xf32, #tpu.memory_space<vmem>>, vector<1x1x8x128xf32>
      %35 = vector.shape_cast %34 : vector<1x1x8x128xf32> to vector<1x8x128xf32>
      %36 = vector.shape_cast %32 : vector<1x8x128xf32> to vector<1x1x8x128xf32>
      tpu.vector_store %arg4[%c0_15, %33, %c0_16, %c0_17], %36 {strides = array<i32>} : memref<1x16x8x128xf32, #tpu.memory_space<vmem>>, vector<1x1x8x128xf32>,
      %c1_i32_18 = arith.constant 1 : i32
      %37 = arith.addi %19, %c1_i32_18 : i32
      %c1_i32_19 = arith.constant 1 : i32
      %38 = arith.addi %19, %c1_i32_19 : i32
      %c1_i32_20 = arith.constant 1 : i32
      %39 = tpu.dynamic_rotate %arg6 by %c1_i32_20 dim 2 : vector<4x8x128xf32>, i32 -> vector<4x8x128xf32>
      %40 = arith.mulf %1, %39 : vector<4x8x128xf32>
      %cst_21 = arith.constant dense<0.000000e+00> : vector<8x128xf32>
      %41 = vector.multi_reduction <add>, %40, %cst_21 [0] : vector<4x8x128xf32> to vector<8x128xf32>
      %42 = vector.shape_cast %41 : vector<8x128xf32> to vector<1x8x128xf32>
      %c1_i32_22 = arith.constant 1 : i32
      %43 = tpu.dynamic_rotate %arg7 by %c1_i32_22 dim 2 : vector<1x8x128xf32>, i32 -> vector<1x8x128xf32>
      %44 = arith.mulf %9, %43 : vector<1x8x128xf32>
      %45 = vector.broadcast %38 : i32 to vector<1x1x128xi32>
      %46 = arith.cmpi sge, %16, %45 : vector<1x1x128xi32>
      %cst_23 = arith.constant 0.000000e+00 : f32
      %47 = vector.shape_cast %46 : vector<1x1x128xi1> to vector<1x1x128xi1>
      %48 = vector.broadcast %47 : vector<1x1x128xi1> to vector<1x8x128xi1>
      %49 = vector.broadcast %cst_23 : f32 to vector<1x8x128xf32>
      %50 = arith.select %48, %44, %49 : vector<1x8x128xi1>, vector<1x8x128xf32>
      %51 = arith.mulf %42, %50 : vector<1x8x128xf32>
      %c0_24 = arith.constant 0 : index
      %52 = arith.index_cast %37 : i32 to index
      %c0_25 = arith.constant 0 : index
      %c0_26 = arith.constant 0 : index
      %53 = vector.load %arg4[%c0_24, %52, %c0_25, %c0_26] : memref<1x16x8x128xf32, #tpu.memory_space<vmem>>, vector<1x1x8x128xf32>
      %54 = vector.shape_cast %53 : vector<1x1x8x128xf32> to vector<1x8x128xf32>
      %55 = vector.shape_cast %51 : vector<1x8x128xf32> to vector<1x1x8x128xf32>
      tpu.vector_store %arg4[%c0_24, %52, %c0_25, %c0_26], %55 {strides = array<i32>} : memref<1x16x8x128xf32, #tpu.memory_space<vmem>>, vector<1x1x8x128xf32>,
      %c2_i32_27 = arith.constant 2 : i32
      %56 = arith.addi %19, %c2_i32_27 : i32
      %c2_i32_28 = arith.constant 2 : i32
      %57 = arith.addi %19, %c2_i32_28 : i32
      %c2_i32_29 = arith.constant 2 : i32
      %58 = tpu.dynamic_rotate %arg6 by %c2_i32_29 dim 2 : vector<4x8x128xf32>, i32 -> vector<4x8x128xf32>
      %59 = arith.mulf %1, %58 : vector<4x8x128xf32>
      %cst_30 = arith.constant dense<0.000000e+00> : vector<8x128xf32>
      %60 = vector.multi_reduction <add>, %59, %cst_30 [0] : vector<4x8x128xf32> to vector<8x128xf32>
      %61 = vector.shape_cast %60 : vector<8x128xf32> to vector<1x8x128xf32>
      %c2_i32_31 = arith.constant 2 : i32
      %62 = tpu.dynamic_rotate %arg7 by %c2_i32_31 dim 2 : vector<1x8x128xf32>, i32 -> vector<1x8x128xf32>
      %63 = arith.mulf %9, %62 : vector<1x8x128xf32>
      %64 = vector.broadcast %57 : i32 to vector<1x1x128xi32>
      %65 = arith.cmpi sge, %16, %64 : vector<1x1x128xi32>
      %cst_32 = arith.constant 0.000000e+00 : f32
      %66 = vector.shape_cast %65 : vector<1x1x128xi1> to vector<1x1x128xi1>
      %67 = vector.broadcast %66 : vector<1x1x128xi1> to vector<1x8x128xi1>
      %68 = vector.broadcast %cst_32 : f32 to vector<1x8x128xf32>
      %69 = arith.select %67, %63, %68 : vector<1x8x128xi1>, vector<1x8x128xf32>
      %70 = arith.mulf %61, %69 : vector<1x8x128xf32>
      %c0_33 = arith.constant 0 : index
      %71 = arith.index_cast %56 : i32 to index
      %c0_34 = arith.constant 0 : index
      %c0_35 = arith.constant 0 : index
      %72 = vector.load %arg4[%c0_33, %71, %c0_34, %c0_35] : memref<1x16x8x128xf32, #tpu.memory_space<vmem>>, vector<1x1x8x128xf32>
      %73 = vector.shape_cast %72 : vector<1x1x8x128xf32> to vector<1x8x128xf32>
      %74 = vector.shape_cast %70 : vector<1x8x128xf32> to vector<1x1x8x128xf32>
      tpu.vector_store %arg4[%c0_33, %71, %c0_34, %c0_35], %74 {strides = array<i32>} : memref<1x16x8x128xf32, #tpu.memory_space<vmem>>, vector<1x1x8x128xf32>,
      %c3_i32 = arith.constant 3 : i32
      %75 = arith.addi %19, %c3_i32 : i32
      %c3_i32_36 = arith.constant 3 : i32
      %76 = arith.addi %19, %c3_i32_36 : i32
      %c3_i32_37 = arith.constant 3 : i32
      %77 = tpu.dynamic_rotate %arg6 by %c3_i32_37 dim 2 : vector<4x8x128xf32>, i32 -> vector<4x8x128xf32>
      %78 = arith.mulf %1, %77 : vector<4x8x128xf32>
      %cst_38 = arith.constant dense<0.000000e+00> : vector<8x128xf32>
      %79 = vector.multi_reduction <add>, %78, %cst_38 [0] : vector<4x8x128xf32> to vector<8x128xf32>
      %80 = vector.shape_cast %79 : vector<8x128xf32> to vector<1x8x128xf32>
      %c3_i32_39 = arith.constant 3 : i32
      %81 = tpu.dynamic_rotate %arg7 by %c3_i32_39 dim 2 : vector<1x8x128xf32>, i32 -> vector<1x8x128xf32>
      %82 = arith.mulf %9, %81 : vector<1x8x128xf32>
      %83 = vector.broadcast %76 : i32 to vector<1x1x128xi32>
      %84 = arith.cmpi sge, %16, %83 : vector<1x1x128xi32>
      %cst_40 = arith.constant 0.000000e+00 : f32
      %85 = vector.shape_cast %84 : vector<1x1x128xi1> to vector<1x1x128xi1>
      %86 = vector.broadcast %85 : vector<1x1x128xi1> to vector<1x8x128xi1>
      %87 = vector.broadcast %cst_40 : f32 to vector<1x8x128xf32>
      %88 = arith.select %86, %82, %87 : vector<1x8x128xi1>, vector<1x8x128xf32>
      %89 = arith.mulf %80, %88 : vector<1x8x128xf32>
      %c0_41 = arith.constant 0 : index
      %90 = arith.index_cast %75 : i32 to index
      %c0_42 = arith.constant 0 : index
      %c0_43 = arith.constant 0 : index
      %91 = vector.load %arg4[%c0_41, %90, %c0_42, %c0_43] : memref<1x16x8x128xf32, #tpu.memory_space<vmem>>, vector<1x1x8x128xf32>
      %92 = vector.shape_cast %91 : vector<1x1x8x128xf32> to vector<1x8x128xf32>
      %93 = vector.shape_cast %89 : vector<1x8x128xf32> to vector<1x1x8x128xf32>
      tpu.vector_store %arg4[%c0_41, %90, %c0_42, %c0_43], %93 {strides = array<i32>} : memref<1x16x8x128xf32, #tpu.memory_space<vmem>>, vector<1x1x8x128xf32>,
      %c4_i32 = arith.constant 4 : i32
      %94 = arith.addi %19, %c4_i32 : i32
      %c4_i32_44 = arith.constant 4 : i32
      %95 = arith.addi %19, %c4_i32_44 : i32
      %c4_i32_45 = arith.constant 4 : i32
      %96 = tpu.dynamic_rotate %arg6 by %c4_i32_45 dim 2 : vector<4x8x128xf32>, i32 -> vector<4x8x128xf32>
      %97 = arith.mulf %1, %96 : vector<4x8x128xf32>
      %cst_46 = arith.constant dense<0.000000e+00> : vector<8x128xf32>
      %98 = vector.multi_reduction <add>, %97, %cst_46 [0] : vector<4x8x128xf32> to vector<8x128xf32>
      %99 = vector.shape_cast %98 : vector<8x128xf32> to vector<1x8x128xf32>
      %c4_i32_47 = arith.constant 4 : i32
      %100 = tpu.dynamic_rotate %arg7 by %c4_i32_47 dim 2 : vector<1x8x128xf32>, i32 -> vector<1x8x128xf32>
      %101 = arith.mulf %9, %100 : vector<1x8x128xf32>
      %102 = vector.broadcast %95 : i32 to vector<1x1x128xi32>
      %103 = arith.cmpi sge, %16, %102 : vector<1x1x128xi32>
      %cst_48 = arith.constant 0.000000e+00 : f32
      %104 = vector.shape_cast %103 : vector<1x1x128xi1> to vector<1x1x128xi1>
      %105 = vector.broadcast %104 : vector<1x1x128xi1> to vector<1x8x128xi1>
      %106 = vector.broadcast %cst_48 : f32 to vector<1x8x128xf32>
      %107 = arith.select %105, %101, %106 : vector<1x8x128xi1>, vector<1x8x128xf32>
      %108 = arith.mulf %99, %107 : vector<1x8x128xf32>
      %c0_49 = arith.constant 0 : index
      %109 = arith.index_cast %94 : i32 to index
      %c0_50 = arith.constant 0 : index
      %c0_51 = arith.constant 0 : index
      %110 = vector.load %arg4[%c0_49, %109, %c0_50, %c0_51] : memref<1x16x8x128xf32, #tpu.memory_space<vmem>>, vector<1x1x8x128xf32>
      %111 = vector.shape_cast %110 : vector<1x1x8x128xf32> to vector<1x8x128xf32>
      %112 = vector.shape_cast %108 : vector<1x8x128xf32> to vector<1x1x8x128xf32>
      tpu.vector_store %arg4[%c0_49, %109, %c0_50, %c0_51], %112 {strides = array<i32>} : memref<1x16x8x128xf32, #tpu.memory_space<vmem>>, vector<1x1x8x128xf32>,
      %c5_i32 = arith.constant 5 : i32
      %113 = arith.addi %19, %c5_i32 : i32
      %c5_i32_52 = arith.constant 5 : i32
      %114 = arith.addi %19, %c5_i32_52 : i32
      %c5_i32_53 = arith.constant 5 : i32
      %115 = tpu.dynamic_rotate %arg6 by %c5_i32_53 dim 2 : vector<4x8x128xf32>, i32 -> vector<4x8x128xf32>
      %116 = arith.mulf %1, %115 : vector<4x8x128xf32>
      %cst_54 = arith.constant dense<0.000000e+00> : vector<8x128xf32>
      %117 = vector.multi_reduction <add>, %116, %cst_54 [0] : vector<4x8x128xf32> to vector<8x128xf32>
      %118 = vector.shape_cast %117 : vector<8x128xf32> to vector<1x8x128xf32>
      %c5_i32_55 = arith.constant 5 : i32
      %119 = tpu.dynamic_rotate %arg7 by %c5_i32_55 dim 2 : vector<1x8x128xf32>, i32 -> vector<1x8x128xf32>
      %120 = arith.mulf %9, %119 : vector<1x8x128xf32>
      %121 = vector.broadcast %114 : i32 to vector<1x1x128xi32>
      %122 = arith.cmpi sge, %16, %121 : vector<1x1x128xi32>
      %cst_56 = arith.constant 0.000000e+00 : f32
      %123 = vector.shape_cast %122 : vector<1x1x128xi1> to vector<1x1x128xi1>
      %124 = vector.broadcast %123 : vector<1x1x128xi1> to vector<1x8x128xi1>
      %125 = vector.broadcast %cst_56 : f32 to vector<1x8x128xf32>
      %126 = arith.select %124, %120, %125 : vector<1x8x128xi1>, vector<1x8x128xf32>
      %127 = arith.mulf %118, %126 : vector<1x8x128xf32>
      %c0_57 = arith.constant 0 : index
      %128 = arith.index_cast %113 : i32 to index
      %c0_58 = arith.constant 0 : index
      %c0_59 = arith.constant 0 : index
      %129 = vector.load %arg4[%c0_57, %128, %c0_58, %c0_59] : memref<1x16x8x128xf32, #tpu.memory_space<vmem>>, vector<1x1x8x128xf32>
      %130 = vector.shape_cast %129 : vector<1x1x8x128xf32> to vector<1x8x128xf32>
      %131 = vector.shape_cast %127 : vector<1x8x128xf32> to vector<1x1x8x128xf32>
      tpu.vector_store %arg4[%c0_57, %128, %c0_58, %c0_59], %131 {strides = array<i32>} : memref<1x16x8x128xf32, #tpu.memory_space<vmem>>, vector<1x1x8x128xf32>,
      %c6_i32 = arith.constant 6 : i32
      %132 = arith.addi %19, %c6_i32 : i32
      %c6_i32_60 = arith.constant 6 : i32
      %133 = arith.addi %19, %c6_i32_60 : i32
      %c6_i32_61 = arith.constant 6 : i32
      %134 = tpu.dynamic_rotate %arg6 by %c6_i32_61 dim 2 : vector<4x8x128xf32>, i32 -> vector<4x8x128xf32>
      %135 = arith.mulf %1, %134 : vector<4x8x128xf32>
      %cst_62 = arith.constant dense<0.000000e+00> : vector<8x128xf32>
      %136 = vector.multi_reduction <add>, %135, %cst_62 [0] : vector<4x8x128xf32> to vector<8x128xf32>
      %137 = vector.shape_cast %136 : vector<8x128xf32> to vector<1x8x128xf32>
      %c6_i32_63 = arith.constant 6 : i32
      %138 = tpu.dynamic_rotate %arg7 by %c6_i32_63 dim 2 : vector<1x8x128xf32>, i32 -> vector<1x8x128xf32>
      %139 = arith.mulf %9, %138 : vector<1x8x128xf32>
      %140 = vector.broadcast %133 : i32 to vector<1x1x128xi32>
      %141 = arith.cmpi sge, %16, %140 : vector<1x1x128xi32>
      %cst_64 = arith.constant 0.000000e+00 : f32
      %142 = vector.shape_cast %141 : vector<1x1x128xi1> to vector<1x1x128xi1>
      %143 = vector.broadcast %142 : vector<1x1x128xi1> to vector<1x8x128xi1>
      %144 = vector.broadcast %cst_64 : f32 to vector<1x8x128xf32>
      %145 = arith.select %143, %139, %144 : vector<1x8x128xi1>, vector<1x8x128xf32>
      %146 = arith.mulf %137, %145 : vector<1x8x128xf32>
      %c0_65 = arith.constant 0 : index
      %147 = arith.index_cast %132 : i32 to index
      %c0_66 = arith.constant 0 : index
      %c0_67 = arith.constant 0 : index
      %148 = vector.load %arg4[%c0_65, %147, %c0_66, %c0_67] : memref<1x16x8x128xf32, #tpu.memory_space<vmem>>, vector<1x1x8x128xf32>
      %149 = vector.shape_cast %148 : vector<1x1x8x128xf32> to vector<1x8x128xf32>
      %150 = vector.shape_cast %146 : vector<1x8x128xf32> to vector<1x1x8x128xf32>
      tpu.vector_store %arg4[%c0_65, %147, %c0_66, %c0_67], %150 {strides = array<i32>} : memref<1x16x8x128xf32, #tpu.memory_space<vmem>>, vector<1x1x8x128xf32>,
      %c7_i32 = arith.constant 7 : i32
      %151 = arith.addi %19, %c7_i32 : i32
      %c7_i32_68 = arith.constant 7 : i32
      %152 = arith.addi %19, %c7_i32_68 : i32
      %c7_i32_69 = arith.constant 7 : i32
      %153 = tpu.dynamic_rotate %arg6 by %c7_i32_69 dim 2 : vector<4x8x128xf32>, i32 -> vector<4x8x128xf32>
      %154 = arith.mulf %1, %153 : vector<4x8x128xf32>
      %cst_70 = arith.constant dense<0.000000e+00> : vector<8x128xf32>
      %155 = vector.multi_reduction <add>, %154, %cst_70 [0] : vector<4x8x128xf32> to vector<8x128xf32>
      %156 = vector.shape_cast %155 : vector<8x128xf32> to vector<1x8x128xf32>
      %c7_i32_71 = arith.constant 7 : i32
      %157 = tpu.dynamic_rotate %arg7 by %c7_i32_71 dim 2 : vector<1x8x128xf32>, i32 -> vector<1x8x128xf32>
      %158 = arith.mulf %9, %157 : vector<1x8x128xf32>
      %159 = vector.broadcast %152 : i32 to vector<1x1x128xi32>
      %160 = arith.cmpi sge, %16, %159 : vector<1x1x128xi32>
      %cst_72 = arith.constant 0.000000e+00 : f32
      %161 = vector.shape_cast %160 : vector<1x1x128xi1> to vector<1x1x128xi1>
      %162 = vector.broadcast %161 : vector<1x1x128xi1> to vector<1x8x128xi1>
      %163 = vector.broadcast %cst_72 : f32 to vector<1x8x128xf32>
      %164 = arith.select %162, %158, %163 : vector<1x8x128xi1>, vector<1x8x128xf32>
      %165 = arith.mulf %156, %164 : vector<1x8x128xf32>
      %c0_73 = arith.constant 0 : index
      %166 = arith.index_cast %151 : i32 to index
      %c0_74 = arith.constant 0 : index
      %c0_75 = arith.constant 0 : index
      %167 = vector.load %arg4[%c0_73, %166, %c0_74, %c0_75] : memref<1x16x8x128xf32, #tpu.memory_space<vmem>>, vector<1x1x8x128xf32>
      %168 = vector.shape_cast %167 : vector<1x1x8x128xf32> to vector<1x8x128xf32>
      %169 = vector.shape_cast %165 : vector<1x8x128xf32> to vector<1x1x8x128xf32>
      tpu.vector_store %arg4[%c0_73, %166, %c0_74, %c0_75], %169 {strides = array<i32>} : memref<1x16x8x128xf32, #tpu.memory_space<vmem>>, vector<1x1x8x128xf32>,
      %c8_i32_76 = arith.constant 8 : i32
      %170 = tpu.dynamic_rotate %arg6 by %c8_i32_76 dim 2 : vector<4x8x128xf32>, i32 -> vector<4x8x128xf32>
      %c8_i32_77 = arith.constant 8 : i32
      %171 = tpu.dynamic_rotate %arg7 by %c8_i32_77 dim 2 : vector<1x8x128xf32>, i32 -> vector<1x8x128xf32>
      scf.yield %170, %171 : vector<4x8x128xf32>, vector<1x8x128xf32>
    }
    %c2_i32_10 = arith.constant 2 : i32
    return
  }
  func.func @transform_0(%arg0: i32, %arg1: i32) -> (i32, i32, i32, i32) {
    %c0_i32 = arith.constant 0 : i32
    %c0_i32_0 = arith.constant 0 : i32
    %c0_i32_1 = arith.constant 0 : i32
    return %arg0, %c0_i32, %arg1, %c0_i32_0 : i32, i32, i32, i32
  }
  func.func @transform_1(%arg0: i32, %arg1: i32) -> (i32, i32, i32, i32) {
    %c0_i32 = arith.constant 0 : i32
    %c0_i32_0 = arith.constant 0 : i32
    %c0_i32_1 = arith.constant 0 : i32
    return %arg0, %c0_i32, %arg1, %c0_i32_0 : i32, i32, i32, i32
  }
  func.func @transform_2(%arg0: i32, %arg1: i32) -> (i32, i32, i32, i32) {
    %c0_i32 = arith.constant 0 : i32
    %c0_i32_0 = arith.constant 0 : i32
    %c0_i32_1 = arith.constant 0 : i32
    return %arg0, %c0_i32, %arg1, %c0_i32_0 : i32, i32, i32, i32
  }
}

</mosaic_0001>

<llo_original>
// kernel: tpu_custom_call.1
$region0: #{tpu_custom_call.1}
  #allocation0 [shape = 'u32[]', space=smem, size = 0x4, offset = 0x4, fixed_abs, tag = 'smem constant byte address 0x4 - core index']
  #allocation1 [shape = 'u32[144,128]{1,0:T(1,128)}', space=vmem, size = 0x12000, scoped, tag = 'internal scratch']
  %s0 = inlined_call_operand.hbm [shape: f32[2,4,8,128], index: 0, kind: input, shape index: {}]
  %s1 = inlined_call_operand.hbm [shape: f32[2,4,8,128], index: 1, kind: input, shape index: {}]
  %s2 = inlined_call_operand.hbm [shape: f32[2,16,8,128], index: 2, kind: output, shape index: {}]
  %s3 = sld [smem:[#allocation0]]
  $region56: #{tpu_custom_call.1} parent=0
    _
  %s5 = ssub.s32 1, %s3
  %s6 = scalar_select 0, %s5, %s3
  $region1: #{tpu_custom_call.1} parent=0
    #allocation2 [shape = 'u8[32768]{0}', space=vmem, size = 0x8000, scoped, tag = 'input window, operand 0']
    #allocation3 [shape = 's32[2]{0}', space=sflag, size = 0x8, scoped, tag = 'scoped memory for tpu_custom_call.1']
    #allocation4 [shape = 's32[2]{0}', space=sflag, size = 0x8, scoped, tag = 'scoped memory for tpu_custom_call.1']
    #allocation5 [shape = 'u8[32768]{0}', space=vmem, size = 0x8000, scoped, tag = 'input window, operand 1']
    #allocation6 [shape = 's32[2]{0}', space=sflag, size = 0x8, scoped, tag = 'scoped memory for tpu_custom_call.1']
    #allocation7 [shape = 'u8[131072]{0}', space=vmem, size = 0x20000, scoped, tag = 'output window, operand 0']
    %7 = vsyncpa [#allocation3], 0
    %s8 = scalar_lea.sflag [#allocation3], 1
    %9 = vsyncpa %s8, 0
    %10 = vsyncpa [#allocation6], 0
    %s11 = scalar_lea.sflag [#allocation6], 1
    %12 = vsyncpa %s11, 0
    %13 = vsyncpa [#allocation4], 0
    %s14 = scalar_lea.sflag [#allocation4], 1
    %15 = vsyncpa %s14, 0
    loop: start=0, step=1, limit=4
    $region2: #{tpu_custom_call.1} parent=1 // loop_pre_header
      _
    $region3: #{tpu_custom_call.1} parent=1 // loop_header
      %s17 = sphi 0, %s21
      %p18 = scmp.ge.s32.totalorder %s17, 4
      %s24 = sphi 0, %s36
      %s25 = sphi 0, %s32
      %s26 = sphi 0, %s24
      %s27 = sphi 0, %s25
      %s28 = sphi 0, %s26
      %s29 = sphi 0, %s27
      %s41 = sphi 0, %s43
      %s44 = sphi 0, %s41
      %s45 = sphi 0, %s44
      %s61 = sphi 0, %s45
      %s69 = sphi 0, %s71
      %s72 = sphi 0, %s69
      %s73 = sphi 0, %s72
      %s89 = sphi 0, %s73
      %s97 = sphi 0, %s99
      %s100 = sphi 0, %s97
      %s101 = sphi 0, %s100
      %s117 = sphi 0, %s101
    $region4: #{tpu_custom_call.1} parent=1 // loop_header_branch
      %20 = sbr.rel (%p18) target = $region8
    $region5: #{tpu_custom_call.1} parent=1 // loop_body
      %s22 = ssub.s32 %s17, 1
      %s23 = ssub.s32 %s17, 2
      %s30 = sadd.s32 1, %s25
      %p31 = scmp.ge.s32.totalorder %s30, 1
      %s32 = scalar_select %p31, 0, %s30
      %s33 = sadd.s32 1, %s24
      %s34 = scalar_select %p31, %s33, %s24
      %p35 = scmp.ge.s32.totalorder %s34, 2
      %s36 = scalar_select %p35, 0, %s34
      %s37 = ssub.s32 %s24, %s36
      %s38 = ssub.s32 %s25, %s32
      %s39 = sor.u32 %s37, %s38
      %p40 = scmp.eq.s32.totalorder %s39, 0
      %s42 = sadd.s32 %s41, 1
      %s43 = scalar_select %p40, %s41, %s42
      %p46 = pneg %p40
      %p47 = scmp.eq.s32.totalorder %s17, 1
      %p48 = por %p46, %p47
      %p49 = scmp.ne.s32.totalorder %s41, %s44
      %p50 = scmp.eq.s32.totalorder %s17, 0
      %p51 = por %p49, %p50
      %p52 = scmp.ne.s32.totalorder %s41, %s44
      %p53 = scmp.eq.s32.totalorder %s22, 1
      %p54 = por %p52, %p53
      %p55 = scmp.ne.s32.totalorder %s44, %s45
      %p56 = scmp.eq.s32.totalorder %s22, 0
      %p57 = por %p55, %p56
      %p58 = scmp.ne.s32.totalorder %s44, %s45
      %p59 = scmp.eq.s32.totalorder %s23, 1
      %p60 = por %p58, %p59
      %p62 = scmp.ne.s32.totalorder %s45, %s61
      %p63 = scmp.eq.s32.totalorder %s23, 0
      %p64 = por %p62, %p63
      %s65 = ssub.s32 %s24, %s36
      %s66 = ssub.s32 %s25, %s32
      %s67 = sor.u32 %s65, %s66
      %p68 = scmp.eq.s32.totalorder %s67, 0
      %s70 = sadd.s32 %s69, 1
      %s71 = scalar_select %p68, %s69, %s70
      %p74 = pneg %p68
      %p75 = scmp.eq.s32.totalorder %s17, 1
      %p76 = por %p74, %p75
      %p77 = scmp.ne.s32.totalorder %s69, %s72
      %p78 = scmp.eq.s32.totalorder %s17, 0
      %p79 = por %p77, %p78
      %p80 = scmp.ne.s32.totalorder %s69, %s72
      %p81 = scmp.eq.s32.totalorder %s22, 1
      %p82 = por %p80, %p81
      %p83 = scmp.ne.s32.totalorder %s72, %s73
      %p84 = scmp.eq.s32.totalorder %s22, 0
      %p85 = por %p83, %p84
      %p86 = scmp.ne.s32.totalorder %s72, %s73
      %p87 = scmp.eq.s32.totalorder %s23, 1
      %p88 = por %p86, %p87
      %p90 = scmp.ne.s32.totalorder %s73, %s89
      %p91 = scmp.eq.s32.totalorder %s23, 0
      %p92 = por %p90, %p91
      %s93 = ssub.s32 %s24, %s36
      %s94 = ssub.s32 %s25, %s32
      %s95 = sor.u32 %s93, %s94
      %p96 = scmp.eq.s32.totalorder %s95, 0
      %s98 = sadd.s32 %s97, 1
      %s99 = scalar_select %p96, %s97, %s98
      %p102 = pneg %p96
      %p103 = scmp.eq.s32.totalorder %s17, 1
      %p104 = por %p102, %p103
      %p105 = scmp.ne.s32.totalorder %s97, %s100
      %p106 = scmp.eq.s32.totalorder %s17, 0
      %p107 = por %p105, %p106
      %p108 = scmp.ne.s32.totalorder %s97, %s100
      %p109 = scmp.eq.s32.totalorder %s22, 1
      %p110 = por %p108, %p109
      %p111 = scmp.ne.s32.totalorder %s100, %s101
      %p112 = scmp.eq.s32.totalorder %s22, 0
      %p113 = por %p111, %p112
      %p114 = scmp.ne.s32.totalorder %s100, %s101
      %p115 = scmp.eq.s32.totalorder %s23, 1
      %p116 = por %p114, %p115
      %p118 = scmp.ne.s32.totalorder %s101, %s117
      %p119 = scmp.eq.s32.totalorder %s23, 0
      %p120 = por %p118, %p119
      %p121 = scmp.le.s32.totalorder 1, %s17
      %p122 = scmp.lt.s32.totalorder %s17, 3
      %p123 = pnand %p121, %p122
      %p124 = pneg %p123
      // Predicated region
      $region9: #{tpu_custom_call.1} parent=5 // pred_check
        _
      $region10: #{tpu_custom_call.1} parent=5 // pred_check_branch
        %126 = sbr.rel (%p123) target = $region12
      $region11: #{tpu_custom_call.1} parent=5 // pred_region
        %s127 = ssub.s32 %s17, 1
      $region12: #{tpu_custom_call.1} parent=5 // pred_fallthru
        _
      %p128 = scmp.lt.s32.totalorder %s17, 2
      // Predicated region
      $region13: #{tpu_custom_call.1} parent=5 // pred_check
        %p129 = pneg %p128
      $region14: #{tpu_custom_call.1} parent=5 // pred_check_branch
        %131 = sbr.rel (%p129) target = $region16
      $region15: #{tpu_custom_call.1} parent=5 // pred_region
        // Predicated region
        $region17: #{tpu_custom_call.1} parent=15 // pred_check
          %p132 = pneg %p51
        $region18: #{tpu_custom_call.1} parent=15 // pred_check_branch
          %134 = sbr.rel (%p132) target = $region20
        $region19: #{tpu_custom_call.1} parent=15 // pred_region
          %s135 = sand.u32 %s41, 1
          %s136 = scalar_lea.sflag [#allocation3], %s135
          %s137 = sand.u32 %s41, 1
          %s138 = smul.addr %s137, 32
          %s139 = scalar_lea.vmem [#allocation2], %s138
          %s141 = ssub.s32 512, 512
          %142 = vsyncadd %s136, %s141
          %s143 = smul.addr %s24, 4
          %s144 = sadd.s32 %s25, %s143
          %s145 = smul.addr %s144, 128
          %s146 = scalar_lea.hbm %s0, %s145
          %s147 = sshll.u32 %s139, 4
          %s148 = int_to_ptr.vmem [resolvable:$true] %s147
          %153 = dma.hbm_to_vmem [thread:$0]  %s146, 512, %s148, %s136, 128, 128, 8
        $region20: #{tpu_custom_call.1} parent=15 // pred_fallthru
          _
        // Predicated region
        $region21: #{tpu_custom_call.1} parent=15 // pred_check
          %p154 = pneg %p79
        $region22: #{tpu_custom_call.1} parent=15 // pred_check_branch
          %156 = sbr.rel (%p154) target = $region24
        $region23: #{tpu_custom_call.1} parent=15 // pred_region
          %s157 = sand.u32 %s69, 1
          %s158 = scalar_lea.sflag [#allocation6], %s157
          %s159 = sand.u32 %s69, 1
          %s160 = smul.addr %s159, 32
          %s161 = scalar_lea.vmem [#allocation5], %s160
          %s163 = ssub.s32 512, 512
          %164 = vsyncadd %s158, %s163
          %s165 = smul.addr %s24, 4
          %s166 = sadd.s32 %s25, %s165
          %s167 = smul.addr %s166, 128
          %s168 = scalar_lea.hbm %s1, %s167
          %s169 = sshll.u32 %s161, 4
          %s170 = int_to_ptr.vmem [resolvable:$true] %s169
          %175 = dma.hbm_to_vmem [thread:$0]  %s168, 512, %s170, %s158, 128, 128, 8
        $region24: #{tpu_custom_call.1} parent=15 // pred_fallthru
          _
      $region16: #{tpu_custom_call.1} parent=5 // pred_fallthru
        _
      %p176 = scmp.le.s32.totalorder 1, %s17
      %p177 = scmp.lt.s32.totalorder %s17, 3
      %p178 = pnand %p176, %p177
      %p179 = pneg %p178
      // Predicated region
      $region25: #{tpu_custom_call.1} parent=5 // pred_check
        _
      $region26: #{tpu_custom_call.1} parent=5 // pred_check_branch
        %181 = sbr.rel (%p178) target = $region28
      $region27: #{tpu_custom_call.1} parent=5 // pred_region
        %s182 = ssub.s32 %s17, 1
        %s183 = sand.u32 %s44, 1
        %s184 = scalar_lea.sflag [#allocation3], %s183
        %s185 = sand.u32 %s44, 1
        %s186 = smul.addr %s185, 32
        %s187 = scalar_lea.vmem [#allocation2], %s186
        // Predicated region
        $region29: #{tpu_custom_call.1} parent=27 // pred_check
          %p188 = pneg %p57
        $region30: #{tpu_custom_call.1} parent=27 // pred_check_branch
          %190 = sbr.rel (%p188) target = $region32
        $region31: #{tpu_custom_call.1} parent=27 // pred_region
          %191 = dma.done %s184, 512
        $region32: #{tpu_custom_call.1} parent=27 // pred_fallthru
          _
        %s192 = sand.u32 %s72, 1
        %s193 = scalar_lea.sflag [#allocation6], %s192
        %s194 = sand.u32 %s72, 1
        %s195 = smul.addr %s194, 32
        %s196 = scalar_lea.vmem [#allocation5], %s195
        // Predicated region
        $region33: #{tpu_custom_call.1} parent=27 // pred_check
          %p197 = pneg %p85
        $region34: #{tpu_custom_call.1} parent=27 // pred_check_branch
          %199 = sbr.rel (%p197) target = $region36
        $region35: #{tpu_custom_call.1} parent=27 // pred_region
          %200 = dma.done %s193, 512
        $region36: #{tpu_custom_call.1} parent=27 // pred_fallthru
          _
        %s201 = sand.u32 %s44, 1
        %s202 = scalar_lea.sflag [#allocation3], %s201
        %s203 = sand.u32 %s44, 1
        %s204 = smul.addr %s203, 32
        %s205 = scalar_lea.vmem [#allocation2], %s204
        %p206 = pneg %p57
        %p207 = pneg %p54
        %s208 = sand.u32 %s72, 1
        %s209 = scalar_lea.sflag [#allocation6], %s208
        %s210 = sand.u32 %s72, 1
        %s211 = smul.addr %s210, 32
        %s212 = scalar_lea.vmem [#allocation5], %s211
        %p213 = pneg %p85
        %p214 = pneg %p82
        %p215 = pneg %p113
        %p216 = pneg %p110
        %s217 = sand.u32 %s100, 1
        %s218 = scalar_lea.sflag [#allocation4], %s217
        %s219 = sand.u32 %s100, 1
        %s220 = smul.addr %s219, 128
        %s221 = scalar_lea.vmem [#allocation7], %s220
        %v222 = vld [vmem:[%s187] sm:$0xff]
        %v223 = vld [vmem:[%s187 + $0x8] sm:$0xff]
        %v224 = vld [vmem:[%s187 + $0x10] sm:$0xff]
        %v225 = vld [vmem:[%s187 + $0x18] sm:$0xff]
        %v226 = vld [vmem:[%s196] sm:$0xff]
        %v227 = vld [vmem:[%s196 + $0x8] sm:$0xff]
        %v228 = vld [vmem:[%s196 + $0x10] sm:$0xff]
        %v229 = vld [vmem:[%s196 + $0x18] sm:$0xff]
        %v230 = vmul.f32 %v222, %v222
        %v231 = vmul.f32 %v223, %v223
        %v232 = vmul.f32 %v224, %v224
        %v233 = vmul.f32 %v225, %v225
        %v234 = vadd.f32 %v230, %v231
        %v235 = vadd.f32 %v234, %v232
        %v236 = vadd.f32 %v235, %v233
        %v237 = vmax.f32 %v236, 1e-24
        %v238 = vrsqrt.pop %v237
        %v239 = vmul.f32 %v226, %v226
        %v240 = vmul.f32 %v227, %v227
        %v241 = vmul.f32 %v228, %v228
        %v242 = vmul.f32 %v229, %v229
        %v243 = vadd.f32 %v239, %v240
        %v244 = vadd.f32 %v243, %v241
        %v245 = vadd.f32 %v244, %v242
        %v246 = vmax.f32 %v245, 1e-24
        %v247 = vrsqrt.pop %v246
        loop: start=0, step=1, limit=2
        $region37: #{tpu_custom_call.1} parent=27 // loop_pre_header
          _
        $region38: #{tpu_custom_call.1} parent=27 // loop_header
          %s249 = sphi 0, %s253
          %p250 = scmp.ge.s32.totalorder %s249, 2
          %v254 = vphi %v226, %v528
          %v255 = vphi %v227, %v529
          %v256 = vphi %v228, %v530
          %v257 = vphi %v229, %v531
          %v258 = vphi %v247, %v535
        $region39: #{tpu_custom_call.1} parent=27 // loop_header_branch
          %252 = sbr.rel (%p250) target = $region43
        $region40: #{tpu_custom_call.1} parent=27 // loop_body
          %s259 = smul.u32 %s249, 8
          %v260 = vmul.f32 %v222, %v254
          %v261 = vmul.f32 %v223, %v255
          %v262 = vmul.f32 %v224, %v256
          %v263 = vmul.f32 %v225, %v257
          %v264 = vadd.f32 %v260, %v261
          %v265 = vadd.f32 %v264, %v262
          %v266 = vadd.f32 %v265, %v263
          %v267 = vmul.f32 %v238, %v258
          %v268 = vmul.f32 %v266, %v267
          %s269 = smul.u32 %s259, 8
          %s270 = scalar_lea.vmem %s221, %s269 [#allocation7]
          %271 = vst [vmem:[%s270] sm:$0xff] %v268
          %s272 = sadd.s32 %s259, 1
          %277 = vrot.lane.b32.xlu0 %v254, 1
          %v278 = vpop.permute.xlu0 %277
          %279 = vrot.lane.b32.xlu0 %v255, 1
          %v280 = vpop.permute.xlu0 %279
          %281 = vrot.lane.b32.xlu0 %v256, 1
          %v282 = vpop.permute.xlu0 %281
          %283 = vrot.lane.b32.xlu0 %v257, 1
          %v284 = vpop.permute.xlu0 %283
          %vm289 = vcmask 7168
          %v290 = vsel %vm289, 0.0, %v278
          %v291 = vsel %vm289, 0.0, %v280
          %v292 = vsel %vm289, 0.0, %v282
          %v293 = vsel %vm289, 0.0, %v284
          %v294 = vmul.f32 %v222, %v290
          %v295 = vmul.f32 %v223, %v291
          %v296 = vmul.f32 %v224, %v292
          %v297 = vmul.f32 %v225, %v293
          %v298 = vadd.f32 %v294, %v295
          %v299 = vadd.f32 %v298, %v296
          %v300 = vadd.f32 %v299, %v297
          %302 = vrot.lane.b32.xlu0 %v258, 1
          %v303 = vpop.permute.xlu0 %302
          %v305 = vsel %vm289, 0.0, %v303
          %v306 = vmul.f32 %v238, %v305
          %v307 = vmul.f32 %v300, %v306
          %s308 = smul.u32 %s272, 8
          %s309 = scalar_lea.vmem %s221, %s308 [#allocation7]
          %310 = vst [vmem:[%s309] sm:$0xff] %v307
          %s311 = sadd.s32 %s259, 2
          %312 = vrot.lane.b32.xlu0 %v254, 2
          %v313 = vpop.permute.xlu0 %312
          %314 = vrot.lane.b32.xlu0 %v255, 2
          %v315 = vpop.permute.xlu0 %314
          %316 = vrot.lane.b32.xlu0 %v256, 2
          %v317 = vpop.permute.xlu0 %316
          %318 = vrot.lane.b32.xlu0 %v257, 2
          %v319 = vpop.permute.xlu0 %318
          %vm324 = vcmask 15360
          %v325 = vsel %vm324, 0.0, %v313
          %v326 = vsel %vm324, 0.0, %v315
          %v327 = vsel %vm324, 0.0, %v317
          %v328 = vsel %vm324, 0.0, %v319
          %v329 = vmul.f32 %v222, %v325
          %v330 = vmul.f32 %v223, %v326
          %v331 = vmul.f32 %v224, %v327
          %v332 = vmul.f32 %v225, %v328
          %v333 = vadd.f32 %v329, %v330
          %v334 = vadd.f32 %v333, %v331
          %v335 = vadd.f32 %v334, %v332
          %336 = vrot.lane.b32.xlu0 %v258, 2
          %v337 = vpop.permute.xlu0 %336
          %v339 = vsel %vm324, 0.0, %v337
          %v340 = vmul.f32 %v238, %v339
          %v341 = vmul.f32 %v335, %v340
          %s342 = smul.u32 %s311, 8
          %s343 = scalar_lea.vmem %s221, %s342 [#allocation7]
          %344 = vst [vmem:[%s343] sm:$0xff] %v341
          %s345 = sadd.s32 %s259, 3
          %346 = vrot.lane.b32.xlu0 %v254, 3
          %v347 = vpop.permute.xlu0 %346
          %348 = vrot.lane.b32.xlu0 %v255, 3
          %v349 = vpop.permute.xlu0 %348
          %350 = vrot.lane.b32.xlu0 %v256, 3
          %v351 = vpop.permute.xlu0 %350
          %352 = vrot.lane.b32.xlu0 %v257, 3
          %v353 = vpop.permute.xlu0 %352
          %vm358 = vcmask 23552
          %v359 = vsel %vm358, 0.0, %v347
          %v360 = vsel %vm358, 0.0, %v349
          %v361 = vsel %vm358, 0.0, %v351
          %v362 = vsel %vm358, 0.0, %v353
          %v363 = vmul.f32 %v222, %v359
          %v364 = vmul.f32 %v223, %v360
          %v365 = vmul.f32 %v224, %v361
          %v366 = vmul.f32 %v225, %v362
          %v367 = vadd.f32 %v363, %v364
          %v368 = vadd.f32 %v367, %v365
          %v369 = vadd.f32 %v368, %v366
          %370 = vrot.lane.b32.xlu0 %v258, 3
          %v371 = vpop.permute.xlu0 %370
          %v373 = vsel %vm358, 0.0, %v371
          %v374 = vmul.f32 %v238, %v373
          %v375 = vmul.f32 %v369, %v374
          %s376 = smul.u32 %s345, 8
          %s377 = scalar_lea.vmem %s221, %s376 [#allocation7]
          %378 = vst [vmem:[%s377] sm:$0xff] %v375
          %s379 = sadd.s32 %s259, 4
          %380 = vrot.lane.b32.xlu0 %v254, 4
          %v381 = vpop.permute.xlu0 %380
          %382 = vrot.lane.b32.xlu0 %v255, 4
          %v383 = vpop.permute.xlu0 %382
          %384 = vrot.lane.b32.xlu0 %v256, 4
          %v385 = vpop.permute.xlu0 %384
          %386 = vrot.lane.b32.xlu0 %v257, 4
          %v387 = vpop.permute.xlu0 %386
          %vm392 = vcmask 31744
          %v393 = vsel %vm392, 0.0, %v381
          %v394 = vsel %vm392, 0.0, %v383
          %v395 = vsel %vm392, 0.0, %v385
          %v396 = vsel %vm392, 0.0, %v387
          %v397 = vmul.f32 %v222, %v393
          %v398 = vmul.f32 %v223, %v394
          %v399 = vmul.f32 %v224, %v395
          %v400 = vmul.f32 %v225, %v396
          %v401 = vadd.f32 %v397, %v398
          %v402 = vadd.f32 %v401, %v399
          %v403 = vadd.f32 %v402, %v400
          %404 = vrot.lane.b32.xlu0 %v258, 4
          %v405 = vpop.permute.xlu0 %404
          %v407 = vsel %vm392, 0.0, %v405
          %v408 = vmul.f32 %v238, %v407
          %v409 = vmul.f32 %v403, %v408
          %s410 = smul.u32 %s379, 8
          %s411 = scalar_lea.vmem %s221, %s410 [#allocation7]
          %412 = vst [vmem:[%s411] sm:$0xff] %v409
          %s413 = sadd.s32 %s259, 5
          %414 = vrot.lane.b32.xlu0 %v254, 5
          %v415 = vpop.permute.xlu0 %414
          %416 = vrot.lane.b32.xlu0 %v255, 5
          %v417 = vpop.permute.xlu0 %416
          %418 = vrot.lane.b32.xlu0 %v256, 5
          %v419 = vpop.permute.xlu0 %418
          %420 = vrot.lane.b32.xlu0 %v257, 5
          %v421 = vpop.permute.xlu0 %420
          %vm426 = vcmask 39936
          %v427 = vsel %vm426, 0.0, %v415
          %v428 = vsel %vm426, 0.0, %v417
          %v429 = vsel %vm426, 0.0, %v419
          %v430 = vsel %vm426, 0.0, %v421
          %v431 = vmul.f32 %v222, %v427
          %v432 = vmul.f32 %v223, %v428
          %v433 = vmul.f32 %v224, %v429
          %v434 = vmul.f32 %v225, %v430
          %v435 = vadd.f32 %v431, %v432
          %v436 = vadd.f32 %v435, %v433
          %v437 = vadd.f32 %v436, %v434
          %438 = vrot.lane.b32.xlu0 %v258, 5
          %v439 = vpop.permute.xlu0 %438
          %v441 = vsel %vm426, 0.0, %v439
          %v442 = vmul.f32 %v238, %v441
          %v443 = vmul.f32 %v437, %v442
          %s444 = smul.u32 %s413, 8
          %s445 = scalar_lea.vmem %s221, %s444 [#allocation7]
          %446 = vst [vmem:[%s445] sm:$0xff] %v443
          %s447 = sadd.s32 %s259, 6
          %448 = vrot.lane.b32.xlu0 %v254, 6
          %v449 = vpop.permute.xlu0 %448
          %450 = vrot.lane.b32.xlu0 %v255, 6
          %v451 = vpop.permute.xlu0 %450
          %452 = vrot.lane.b32.xlu0 %v256, 6
          %v453 = vpop.permute.xlu0 %452
          %454 = vrot.lane.b32.xlu0 %v257, 6
          %v455 = vpop.permute.xlu0 %454
          %vm460 = vcmask 48128
          %v461 = vsel %vm460, 0.0, %v449
          %v462 = vsel %vm460, 0.0, %v451
          %v463 = vsel %vm460, 0.0, %v453
          %v464 = vsel %vm460, 0.0, %v455
          %v465 = vmul.f32 %v222, %v461
          %v466 = vmul.f32 %v223, %v462
          %v467 = vmul.f32 %v224, %v463
          %v468 = vmul.f32 %v225, %v464
          %v469 = vadd.f32 %v465, %v466
          %v470 = vadd.f32 %v469, %v467
          %v471 = vadd.f32 %v470, %v468
          %472 = vrot.lane.b32.xlu0 %v258, 6
          %v473 = vpop.permute.xlu0 %472
          %v475 = vsel %vm460, 0.0, %v473
          %v476 = vmul.f32 %v238, %v475
          %v477 = vmul.f32 %v471, %v476
          %s478 = smul.u32 %s447, 8
          %s479 = scalar_lea.vmem %s221, %s478 [#allocation7]
          %480 = vst [vmem:[%s479] sm:$0xff] %v477
          %s481 = sadd.s32 %s259, 7
          %482 = vrot.lane.b32.xlu0 %v254, 7
          %v483 = vpop.permute.xlu0 %482
          %484 = vrot.lane.b32.xlu0 %v255, 7
          %v485 = vpop.permute.xlu0 %484
          %486 = vrot.lane.b32.xlu0 %v256, 7
          %v487 = vpop.permute.xlu0 %486
          %488 = vrot.lane.b32.xlu0 %v257, 7
          %v489 = vpop.permute.xlu0 %488
          %vm494 = vcmask 56320
          %v495 = vsel %vm494, 0.0, %v483
          %v496 = vsel %vm494, 0.0, %v485
          %v497 = vsel %vm494, 0.0, %v487
          %v498 = vsel %vm494, 0.0, %v489
          %v499 = vmul.f32 %v222, %v495
          %v500 = vmul.f32 %v223, %v496
          %v501 = vmul.f32 %v224, %v497
          %v502 = vmul.f32 %v225, %v498
          %v503 = vadd.f32 %v499, %v500
          %v504 = vadd.f32 %v503, %v501
          %v505 = vadd.f32 %v504, %v502
          %506 = vrot.lane.b32.xlu0 %v258, 7
          %v507 = vpop.permute.xlu0 %506
          %v509 = vsel %vm494, 0.0, %v507
          %v510 = vmul.f32 %v238, %v509
          %v511 = vmul.f32 %v505, %v510
          %s512 = smul.u32 %s481, 8
          %s513 = scalar_lea.vmem %s221, %s512 [#allocation7]
          %514 = vst [vmem:[%s513] sm:$0xff] %v511
          %515 = vrot.lane.b32.xlu0 %v254, 8
          %v516 = vpop.permute.xlu0 %515
          %517 = vrot.lane.b32.xlu0 %v255, 8
          %v518 = vpop.permute.xlu0 %517
          %519 = vrot.lane.b32.xlu0 %v256, 8
          %v520 = vpop.permute.xlu0 %519
          %521 = vrot.lane.b32.xlu0 %v257, 8
          %v522 = vpop.permute.xlu0 %521
          %vm527 = vcmask 64512
          %v528 = vsel %vm527, 0.0, %v516
          %v529 = vsel %vm527, 0.0, %v518
          %v530 = vsel %vm527, 0.0, %v520
          %v531 = vsel %vm527, 0.0, %v522
          %532 = vrot.lane.b32.xlu0 %v258, 8
          %v533 = vpop.permute.xlu0 %532
          %v535 = vsel %vm527, 0.0, %v533
        $region41: #{tpu_custom_call.1} parent=27 // loop_footer
          %s253 = sadd.s32 1, %s249
        $region42: #{tpu_custom_call.1} parent=27 // loop_footer_branch
          %248 = sbr.rel target = $region38
        $region43: #{tpu_custom_call.1} parent=27 // loop_exit
          _
        %s536 = sand.u32 %s100, 1
        %s537 = scalar_lea.sflag [#allocation4], %s536
        %s538 = sand.u32 %s100, 1
        %s539 = smul.addr %s538, 128
        %s540 = scalar_lea.vmem [#allocation7], %s539
        // Predicated region
        $region44: #{tpu_custom_call.1} parent=27 // pred_check
          %p541 = pneg %p110
        $region45: #{tpu_custom_call.1} parent=27 // pred_check_branch
          %543 = sbr.rel (%p541) target = $region47
        $region46: #{tpu_custom_call.1} parent=27 // pred_region
          %s545 = ssub.s32 2048, 2048
          %546 = vsyncadd %s537, %s545
          %s547 = smul.addr %s26, 16
          %s548 = sadd.s32 %s27, %s547
          %s549 = smul.addr %s548, 128
          %s550 = scalar_lea.hbm %s2, %s549
          %s551 = sshll.u32 %s540, 4
          %s552 = int_to_ptr.vmem [resolvable:$true] %s551
          %557 = dma.vmem_to_hbm [thread:$0]  %s552, 2048, %s550, %s537, 128, 128, 8
        $region47: #{tpu_custom_call.1} parent=27 // pred_fallthru
          _
      $region28: #{tpu_custom_call.1} parent=5 // pred_fallthru
        _
      %p558 = scmp.le.s32.totalorder 2, %s17
      // Predicated region
      $region48: #{tpu_custom_call.1} parent=5 // pred_check
        %p559 = pneg %p558
      $region49: #{tpu_custom_call.1} parent=5 // pred_check_branch
        %561 = sbr.rel (%p559) target = $region51
      $region50: #{tpu_custom_call.1} parent=5 // pred_region
        %s562 = ssub.s32 %s17, 2
        // Predicated region
        $region52: #{tpu_custom_call.1} parent=50 // pred_check
          %p563 = pneg %p116
        $region53: #{tpu_custom_call.1} parent=50 // pred_check_branch
          %565 = sbr.rel (%p563) target = $region55
        $region54: #{tpu_custom_call.1} parent=50 // pred_region
          %s566 = sand.u32 %s101, 1
          %s567 = scalar_lea.sflag [#allocation4], %s566
          %s568 = sand.u32 %s101, 1
          %s569 = smul.addr %s568, 128
          %s570 = scalar_lea.vmem [#allocation7], %s569
          %571 = dma.done %s567, 2048
        $region55: #{tpu_custom_call.1} parent=50 // pred_fallthru
          _
      $region51: #{tpu_custom_call.1} parent=5 // pred_fallthru
        _
    $region6: #{tpu_custom_call.1} parent=1 // loop_footer
      %s21 = sadd.s32 1, %s17
    $region7: #{tpu_custom_call.1} parent=1 // loop_footer_branch
      %16 = sbr.rel target = $region3
    $region8: #{tpu_custom_call.1} parent=1 // loop_exit
      _
    %572 = vsyncpa [#allocation3], 1
    %s573 = scalar_lea.sflag [#allocation3], 1
    %574 = vsyncpa %s573, 1
    %575 = vsyncpa [#allocation6], 1
    %s576 = scalar_lea.sflag [#allocation6], 1
    %577 = vsyncpa %s576, 1
    %578 = vsyncpa [#allocation4], 1
    %s579 = scalar_lea.sflag [#allocation4], 1
    %580 = vsyncpa %s579, 1

// kernel: tpu_custom_call.1
$region0: #{tpu_custom_call.1}
  #allocation0 [shape = 'u32[]', space=smem, size = 0x4, offset = 0x4, fixed_abs, tag = 'smem constant byte address 0x4 - core index']
  #allocation1 [shape = 'u32[144,128]{1,0:T(1,128)}', space=vmem, size = 0x12000, scoped, tag = 'internal scratch']
  %s0 = inlined_call_operand.hbm [shape: f32[2,4,8,128], index: 0, kind: input, shape index: {}]
  %s1 = inlined_call_operand.hbm [shape: f32[2,4,8,128], index: 1, kind: input, shape index: {}]
  %s2 = inlined_call_operand.hbm [shape: f32[2,16,8,128], index: 2, kind: output, shape index: {}]
  %s3 = sld [smem:[#allocation0]]
  $region56: #{tpu_custom_call.1} parent=0
    _
  %s5 = ssub.s32 1, %s3
  %s6 = scalar_select 0, %s5, %s3
  $region1: #{tpu_custom_call.1} parent=0
    #allocation2 [shape = 'u8[32768]{0}', space=vmem, size = 0x8000, scoped, tag = 'input window, operand 0']
    #allocation3 [shape = 's32[2]{0}', space=sflag, size = 0x8, scoped, tag = 'scoped memory for tpu_custom_call.1']
    #allocation4 [shape = 's32[2]{0}', space=sflag, size = 0x8, scoped, tag = 'scoped memory for tpu_custom_call.1']
    #allocation5 [shape = 'u8[32768]{0}', space=vmem, size = 0x8000, scoped, tag = 'input window, operand 1']
    #allocation6 [shape = 's32[2]{0}', space=sflag, size = 0x8, scoped, tag = 'scoped memory for tpu_custom_call.1']
    #allocation7 [shape = 'u8[131072]{0}', space=vmem, size = 0x20000, scoped, tag = 'output window, operand 0']
    %7 = vsyncpa [#allocation3], 0
    %s8 = scalar_lea.sflag [#allocation3], 1
    %9 = vsyncpa %s8, 0
    %10 = vsyncpa [#allocation6], 0
    %s11 = scalar_lea.sflag [#allocation6], 1
    %12 = vsyncpa %s11, 0
    %13 = vsyncpa [#allocation4], 0
    %s14 = scalar_lea.sflag [#allocation4], 1
    %15 = vsyncpa %s14, 0
    loop: start=0, step=1, limit=4
    $region2: #{tpu_custom_call.1} parent=1 // loop_pre_header
      _
    $region3: #{tpu_custom_call.1} parent=1 // loop_header
      %s17 = sphi 0, %s21
      %p18 = scmp.ge.s32.totalorder %s17, 4
      %s24 = sphi 0, %s36
      %s25 = sphi 0, %s32
      %s26 = sphi 0, %s24
      %s27 = sphi 0, %s25
      %s28 = sphi 0, %s26
      %s29 = sphi 0, %s27
      %s41 = sphi 0, %s43
      %s44 = sphi 0, %s41
      %s45 = sphi 0, %s44
      %s61 = sphi 0, %s45
      %s69 = sphi 0, %s71
      %s72 = sphi 0, %s69
      %s73 = sphi 0, %s72
      %s89 = sphi 0, %s73
      %s97 = sphi 0, %s99
      %s100 = sphi 0, %s97
      %s101 = sphi 0, %s100
      %s117 = sphi 0, %s101
    $region4: #{tpu_custom_call.1} parent=1 // loop_header_branch
      %20 = sbr.rel (%p18) target = $region8
    $region5: #{tpu_custom_call.1} parent=1 // loop_body
      %s22 = ssub.s32 %s17, 1
      %s23 = ssub.s32 %s17, 2
      %s30 = sadd.s32 1, %s25
      %p31 = scmp.ge.s32.totalorder %s30, 1
      %s32 = scalar_select %p31, 0, %s30
      %s33 = sadd.s32 1, %s24
      %s34 = scalar_select %p31, %s33, %s24
      %p35 = scmp.ge.s32.totalorder %s34, 2
      %s36 = scalar_select %p35, 0, %s34
      %s37 = ssub.s32 %s24, %s36
      %s38 = ssub.s32 %s25, %s32
      %s39 = sor.u32 %s37, %s38
      %p40 = scmp.eq.s32.totalorder %s39, 0
      %s42 = sadd.s32 %s41, 1
      %s43 = scalar_select %p40, %s41, %s42
      %p46 = pneg %p40
      %p47 = scmp.eq.s32.totalorder %s17, 1
      %p48 = por %p46, %p47
      %p49 = scmp.ne.s32.totalorder %s41, %s44
      %p50 = scmp.eq.s32.totalorder %s17, 0
      %p51 = por %p49, %p50
      %p52 = scmp.ne.s32.totalorder %s41, %s44
      %p53 = scmp.eq.s32.totalorder %s22, 1
      %p54 = por %p52, %p53
      %p55 = scmp.ne.s32.totalorder %s44, %s45
      %p56 = scmp.eq.s32.totalorder %s22, 0
      %p57 = por %p55, %p56
      %p58 = scmp.ne.s32.totalorder %s44, %s45
      %p59 = scmp.eq.s32.totalorder %s23, 1
      %p60 = por %p58, %p59
      %p62 = scmp.ne.s32.totalorder %s45, %s61
      %p63 = scmp.eq.s32.totalorder %s23, 0
      %p64 = por %p62, %p63
      %s65 = ssub.s32 %s24, %s36
      %s66 = ssub.s32 %s25, %s32
      %s67 = sor.u32 %s65, %s66
      %p68 = scmp.eq.s32.totalorder %s67, 0
      %s70 = sadd.s32 %s69, 1
      %s71 = scalar_select %p68, %s69, %s70
      %p74 = pneg %p68
      %p75 = scmp.eq.s32.totalorder %s17, 1
      %p76 = por %p74, %p75
      %p77 = scmp.ne.s32.totalorder %s69, %s72
      %p78 = scmp.eq.s32.totalorder %s17, 0
      %p79 = por %p77, %p78
      %p80 = scmp.ne.s32.totalorder %s69, %s72
      %p81 = scmp.eq.s32.totalorder %s22, 1
      %p82 = por %p80, %p81
      %p83 = scmp.ne.s32.totalorder %s72, %s73
      %p84 = scmp.eq.s32.totalorder %s22, 0
      %p85 = por %p83, %p84
      %p86 = scmp.ne.s32.totalorder %s72, %s73
      %p87 = scmp.eq.s32.totalorder %s23, 1
      %p88 = por %p86, %p87
      %p90 = scmp.ne.s32.totalorder %s73, %s89
      %p91 = scmp.eq.s32.totalorder %s23, 0
      %p92 = por %p90, %p91
      %s93 = ssub.s32 %s24, %s36
      %s94 = ssub.s32 %s25, %s32
      %s95 = sor.u32 %s93, %s94
      %p96 = scmp.eq.s32.totalorder %s95, 0
      %s98 = sadd.s32 %s97, 1
      %s99 = scalar_select %p96, %s97, %s98
      %p102 = pneg %p96
      %p103 = scmp.eq.s32.totalorder %s17, 1
      %p104 = por %p102, %p103
      %p105 = scmp.ne.s32.totalorder %s97, %s100
      %p106 = scmp.eq.s32.totalorder %s17, 0
      %p107 = por %p105, %p106
      %p108 = scmp.ne.s32.totalorder %s97, %s100
      %p109 = scmp.eq.s32.totalorder %s22, 1
      %p110 = por %p108, %p109
      %p111 = scmp.ne.s32.totalorder %s100, %s101
      %p112 = scmp.eq.s32.totalorder %s22, 0
      %p113 = por %p111, %p112
      %p114 = scmp.ne.s32.totalorder %s100, %s101
      %p115 = scmp.eq.s32.totalorder %s23, 1
      %p116 = por %p114, %p115
      %p118 = scmp.ne.s32.totalorder %s101, %s117
      %p119 = scmp.eq.s32.totalorder %s23, 0
      %p120 = por %p118, %p119
      %p121 = scmp.le.s32.totalorder 1, %s17
      %p122 = scmp.lt.s32.totalorder %s17, 3
      %p123 = pnand %p121, %p122
      %p124 = pneg %p123
      // Predicated region
      $region9: #{tpu_custom_call.1} parent=5 // pred_check
        _
      $region10: #{tpu_custom_call.1} parent=5 // pred_check_branch
        %126 = sbr.rel (%p123) target = $region12
      $region11: #{tpu_custom_call.1} parent=5 // pred_region
        %s127 = ssub.s32 %s17, 1
      $region12: #{tpu_custom_call.1} parent=5 // pred_fallthru
        _
      %p128 = scmp.lt.s32.totalorder %s17, 2
      // Predicated region
      $region13: #{tpu_custom_call.1} parent=5 // pred_check
        %p129 = pneg %p128
      $region14: #{tpu_custom_call.1} parent=5 // pred_check_branch
        %131 = sbr.rel (%p129) target = $region16
      $region15: #{tpu_custom_call.1} parent=5 // pred_region
        // Predicated region
        $region17: #{tpu_custom_call.1} parent=15 // pred_check
          %p132 = pneg %p51
        $region18: #{tpu_custom_call.1} parent=15 // pred_check_branch
          %134 = sbr.rel (%p132) target = $region20
        $region19: #{tpu_custom_call.1} parent=15 // pred_region
          %s135 = sand.u32 %s41, 1
          %s136 = scalar_lea.sflag [#allocation3], %s135
          %s137 = sand.u32 %s41, 1
          %s138 = smul.addr %s137, 32
          %s139 = scalar_lea.vmem [#allocation2], %s138
          %s141 = ssub.s32 512, 512
          %142 = vsyncadd %s136, %s141
          %s143 = smul.addr %s24, 4
          %s144 = sadd.s32 %s25, %s143
          %s145 = smul.addr %s144, 128
          %s146 = scalar_lea.hbm %s0, %s145
          %s147 = sshll.u32 %s139, 4
          %s148 = int_to_ptr.vmem [resolvable:$true] %s147
          %153 = dma.hbm_to_vmem [thread:$0]  %s146, 512, %s148, %s136, 128, 128, 8
        $region20: #{tpu_custom_call.1} parent=15 // pred_fallthru
          _
        // Predicated region
        $region21: #{tpu_custom_call.1} parent=15 // pred_check
          %p154 = pneg %p79
        $region22: #{tpu_custom_call.1} parent=15 // pred_check_branch
          %156 = sbr.rel (%p154) target = $region24
        $region23: #{tpu_custom_call.1} parent=15 // pred_region
          %s157 = sand.u32 %s69, 1
          %s158 = scalar_lea.sflag [#allocation6], %s157
          %s159 = sand.u32 %s69, 1
          %s160 = smul.addr %s159, 32
          %s161 = scalar_lea.vmem [#allocation5], %s160
          %s163 = ssub.s32 512, 512
          %164 = vsyncadd %s158, %s163
          %s165 = smul.addr %s24, 4
          %s166 = sadd.s32 %s25, %s165
          %s167 = smul.addr %s166, 128
          %s168 = scalar_lea.hbm %s1, %s167
          %s169 = sshll.u32 %s161, 4
          %s170 = int_to_ptr.vmem [resolvable:$true] %s169
          %175 = dma.hbm_to_vmem [thread:$0]  %s168, 512, %s170, %s158, 128, 128, 8
        $region24: #{tpu_custom_call.1} parent=15 // pred_fallthru
          _
      $region16: #{tpu_custom_call.1} parent=5 // pred_fallthru
        _
      %p176 = scmp.le.s32.totalorder 1, %s17
      %p177 = scmp.lt.s32.totalorder %s17, 3
      %p178 = pnand %p176, %p177
      %p179 = pneg %p178
      // Predicated region
      $region25: #{tpu_custom_call.1} parent=5 // pred_check
        _
      $region26: #{tpu_custom_call.1} parent=5 // pred_check_branch
        %181 = sbr.rel (%p178) target = $region28
      $region27: #{tpu_custom_call.1} parent=5 // pred_region
        %s182 = ssub.s32 %s17, 1
        %s183 = sand.u32 %s44, 1
        %s184 = scalar_lea.sflag [#allocation3], %s183
        %s185 = sand.u32 %s44, 1
        %s186 = smul.addr %s185, 32
        %s187 = scalar_lea.vmem [#allocation2], %s186
        // Predicated region
        $region29: #{tpu_custom_call.1} parent=27 // pred_check
          %p188 = pneg %p57
        $region30: #{tpu_custom_call.1} parent=27 // pred_check_branch
          %190 = sbr.rel (%p188) target = $region32
        $region31: #{tpu_custom_call.1} parent=27 // pred_region
          %191 = dma.done %s184, 512
        $region32: #{tpu_custom_call.1} parent=27 // pred_fallthru
          _
        %s192 = sand.u32 %s72, 1
        %s193 = scalar_lea.sflag [#allocation6], %s192
        %s194 = sand.u32 %s72, 1
        %s195 = smul.addr %s194, 32
        %s196 = scalar_lea.vmem [#allocation5], %s195
        // Predicated region
        $region33: #{tpu_custom_call.1} parent=27 // pred_check
          %p197 = pneg %p85
        $region34: #{tpu_custom_call.1} parent=27 // pred_check_branch
          %199 = sbr.rel (%p197) target = $region36
        $region35: #{tpu_custom_call.1} parent=27 // pred_region
          %200 = dma.done %s193, 512
        $region36: #{tpu_custom_call.1} parent=27 // pred_fallthru
          _
        %s201 = sand.u32 %s44, 1
        %s202 = scalar_lea.sflag [#allocation3], %s201
        %s203 = sand.u32 %s44, 1
        %s204 = smul.addr %s203, 32
        %s205 = scalar_lea.vmem [#allocation2], %s204
        %p206 = pneg %p57
        %p207 = pneg %p54
        %s208 = sand.u32 %s72, 1
        %s209 = scalar_lea.sflag [#allocation6], %s208
        %s210 = sand.u32 %s72, 1
        %s211 = smul.addr %s210, 32
        %s212 = scalar_lea.vmem [#allocation5], %s211
        %p213 = pneg %p85
        %p214 = pneg %p82
        %p215 = pneg %p113
        %p216 = pneg %p110
        %s217 = sand.u32 %s100, 1
        %s218 = scalar_lea.sflag [#allocation4], %s217
        %s219 = sand.u32 %s100, 1
        %s220 = smul.addr %s219, 128
        %s221 = scalar_lea.vmem [#allocation7], %s220
        %v222 = vld [vmem:[%s187] sm:$0xff]
        %v223 = vld [vmem:[%s187 + $0x8] sm:$0xff]
        %v224 = vld [vmem:[%s187 + $0x10] sm:$0xff]
        %v225 = vld [vmem:[%s187 + $0x18] sm:$0xff]
        %v226 = vld [vmem:[%s196] sm:$0xff]
        %v227 = vld [vmem:[%s196 + $0x8] sm:$0xff]
        %v228 = vld [vmem:[%s196 + $0x10] sm:$0xff]
        %v229 = vld [vmem:[%s196 + $0x18] sm:$0xff]
        %v230 = vmul.f32 %v222, %v222
        %v231 = vmul.f32 %v223, %v223
        %v232 = vmul.f32 %v224, %v224
        %v233 = vmul.f32 %v225, %v225
        %v234 = vadd.f32 %v230, %v231
        %v235 = vadd.f32 %v234, %v232
        %v236 = vadd.f32 %v235, %v233
        %v237 = vmax.f32 %v236, 1e-24
        %v238 = vrsqrt.pop %v237
        %v239 = vmul.f32 %v226, %v226
        %v240 = vmul.f32 %v227, %v227
        %v241 = vmul.f32 %v228, %v228
        %v242 = vmul.f32 %v229, %v229
        %v243 = vadd.f32 %v239, %v240
        %v244 = vadd.f32 %v243, %v241
        %v245 = vadd.f32 %v244, %v242
        %v246 = vmax.f32 %v245, 1e-24
        %v247 = vrsqrt.pop %v246
        %v248 = vlaneseq
        %v249 = vand.u32 %v248, 127
        loop: start=0, step=1, limit=2
        $region37: #{tpu_custom_call.1} parent=27 // loop_pre_header
          _
        $region38: #{tpu_custom_call.1} parent=27 // loop_header
          %s251 = sphi 0, %s255
          %p252 = scmp.ge.s32.totalorder %s251, 2
          %v256 = vphi %v226, %v476
          %v257 = vphi %v227, %v478
          %v258 = vphi %v228, %v480
          %v259 = vphi %v229, %v482
          %v260 = vphi %v247, %v484
        $region39: #{tpu_custom_call.1} parent=27 // loop_header_branch
          %254 = sbr.rel (%p252) target = $region43
        $region40: #{tpu_custom_call.1} parent=27 // loop_body
          %s261 = smul.u32 %s251, 8
          %v262 = vmul.f32 %v222, %v256
          %v263 = vmul.f32 %v223, %v257
          %v264 = vmul.f32 %v224, %v258
          %v265 = vmul.f32 %v225, %v259
          %v266 = vadd.f32 %v262, %v263
          %v267 = vadd.f32 %v266, %v264
          %v268 = vadd.f32 %v267, %v265
          %v269 = vmul.f32 %v238, %v260
          %v270 = vstv %s261
          %vm271 = vcmp.ge.s32.totalorder %v249, %v270
          %v272 = vsel %vm271, 1, 0
          %vm273 = vcmp.eq.s32.totalorder %v272, 1
          %v274 = vsel %vm273, %v269, 0.0
          %v275 = vmul.f32 %v268, %v274
          %s276 = smul.u32 %s261, 8
          %s277 = scalar_lea.vmem %s221, %s276 [#allocation7]
          %278 = vst [vmem:[%s277] sm:$0xff] %v275
          %s279 = sadd.s32 %s261, 1
          %280 = vrot.lane.b32.xlu0 %v256, 1
          %v281 = vpop.permute.xlu0 %280
          %282 = vrot.lane.b32.xlu0 %v257, 1
          %v283 = vpop.permute.xlu0 %282
          %284 = vrot.lane.b32.xlu0 %v258, 1
          %v285 = vpop.permute.xlu0 %284
          %286 = vrot.lane.b32.xlu0 %v259, 1
          %v287 = vpop.permute.xlu0 %286
          %v288 = vmul.f32 %v222, %v281
          %v289 = vmul.f32 %v223, %v283
          %v290 = vmul.f32 %v224, %v285
          %v291 = vmul.f32 %v225, %v287
          %v292 = vadd.f32 %v288, %v289
          %v293 = vadd.f32 %v292, %v290
          %v294 = vadd.f32 %v293, %v291
          %295 = vrot.lane.b32.xlu0 %v260, 1
          %v296 = vpop.permute.xlu0 %295
          %v297 = vmul.f32 %v238, %v296
          %v298 = vstv %s279
          %vm299 = vcmp.ge.s32.totalorder %v249, %v298
          %v300 = vsel %vm299, 1, 0
          %vm301 = vcmp.eq.s32.totalorder %v300, 1
          %v302 = vsel %vm301, %v297, 0.0
          %v303 = vmul.f32 %v294, %v302
          %s304 = smul.u32 %s279, 8
          %s305 = scalar_lea.vmem %s221, %s304 [#allocation7]
          %306 = vst [vmem:[%s305] sm:$0xff] %v303
          %s307 = sadd.s32 %s261, 2
          %308 = vrot.lane.b32.xlu0 %v256, 2
          %v309 = vpop.permute.xlu0 %308
          %310 = vrot.lane.b32.xlu0 %v257, 2
          %v311 = vpop.permute.xlu0 %310
          %312 = vrot.lane.b32.xlu0 %v258, 2
          %v313 = vpop.permute.xlu0 %312
          %314 = vrot.lane.b32.xlu0 %v259, 2
          %v315 = vpop.permute.xlu0 %314
          %v316 = vmul.f32 %v222, %v309
          %v317 = vmul.f32 %v223, %v311
          %v318 = vmul.f32 %v224, %v313
          %v319 = vmul.f32 %v225, %v315
          %v320 = vadd.f32 %v316, %v317
          %v321 = vadd.f32 %v320, %v318
          %v322 = vadd.f32 %v321, %v319
          %323 = vrot.lane.b32.xlu0 %v260, 2
          %v324 = vpop.permute.xlu0 %323
          %v325 = vmul.f32 %v238, %v324
          %v326 = vstv %s307
          %vm327 = vcmp.ge.s32.totalorder %v249, %v326
          %v328 = vsel %vm327, 1, 0
          %vm329 = vcmp.eq.s32.totalorder %v328, 1
          %v330 = vsel %vm329, %v325, 0.0
          %v331 = vmul.f32 %v322, %v330
          %s332 = smul.u32 %s307, 8
          %s333 = scalar_lea.vmem %s221, %s332 [#allocation7]
          %334 = vst [vmem:[%s333] sm:$0xff] %v331
          %s335 = sadd.s32 %s261, 3
          %336 = vrot.lane.b32.xlu0 %v256, 3
          %v337 = vpop.permute.xlu0 %336
          %338 = vrot.lane.b32.xlu0 %v257, 3
          %v339 = vpop.permute.xlu0 %338
          %340 = vrot.lane.b32.xlu0 %v258, 3
          %v341 = vpop.permute.xlu0 %340
          %342 = vrot.lane.b32.xlu0 %v259, 3
          %v343 = vpop.permute.xlu0 %342
          %v344 = vmul.f32 %v222, %v337
          %v345 = vmul.f32 %v223, %v339
          %v346 = vmul.f32 %v224, %v341
          %v347 = vmul.f32 %v225, %v343
          %v348 = vadd.f32 %v344, %v345
          %v349 = vadd.f32 %v348, %v346
          %v350 = vadd.f32 %v349, %v347
          %351 = vrot.lane.b32.xlu0 %v260, 3
          %v352 = vpop.permute.xlu0 %351
          %v353 = vmul.f32 %v238, %v352
          %v354 = vstv %s335
          %vm355 = vcmp.ge.s32.totalorder %v249, %v354
          %v356 = vsel %vm355, 1, 0
          %vm357 = vcmp.eq.s32.totalorder %v356, 1
          %v358 = vsel %vm357, %v353, 0.0
          %v359 = vmul.f32 %v350, %v358
          %s360 = smul.u32 %s335, 8
          %s361 = scalar_lea.vmem %s221, %s360 [#allocation7]
          %362 = vst [vmem:[%s361] sm:$0xff] %v359
          %s363 = sadd.s32 %s261, 4
          %364 = vrot.lane.b32.xlu0 %v256, 4
          %v365 = vpop.permute.xlu0 %364
          %366 = vrot.lane.b32.xlu0 %v257, 4
          %v367 = vpop.permute.xlu0 %366
          %368 = vrot.lane.b32.xlu0 %v258, 4
          %v369 = vpop.permute.xlu0 %368
          %370 = vrot.lane.b32.xlu0 %v259, 4
          %v371 = vpop.permute.xlu0 %370
          %v372 = vmul.f32 %v222, %v365
          %v373 = vmul.f32 %v223, %v367
          %v374 = vmul.f32 %v224, %v369
          %v375 = vmul.f32 %v225, %v371
          %v376 = vadd.f32 %v372, %v373
          %v377 = vadd.f32 %v376, %v374
          %v378 = vadd.f32 %v377, %v375
          %379 = vrot.lane.b32.xlu0 %v260, 4
          %v380 = vpop.permute.xlu0 %379
          %v381 = vmul.f32 %v238, %v380
          %v382 = vstv %s363
          %vm383 = vcmp.ge.s32.totalorder %v249, %v382
          %v384 = vsel %vm383, 1, 0
          %vm385 = vcmp.eq.s32.totalorder %v384, 1
          %v386 = vsel %vm385, %v381, 0.0
          %v387 = vmul.f32 %v378, %v386
          %s388 = smul.u32 %s363, 8
          %s389 = scalar_lea.vmem %s221, %s388 [#allocation7]
          %390 = vst [vmem:[%s389] sm:$0xff] %v387
          %s391 = sadd.s32 %s261, 5
          %392 = vrot.lane.b32.xlu0 %v256, 5
          %v393 = vpop.permute.xlu0 %392
          %394 = vrot.lane.b32.xlu0 %v257, 5
          %v395 = vpop.permute.xlu0 %394
          %396 = vrot.lane.b32.xlu0 %v258, 5
          %v397 = vpop.permute.xlu0 %396
          %398 = vrot.lane.b32.xlu0 %v259, 5
          %v399 = vpop.permute.xlu0 %398
          %v400 = vmul.f32 %v222, %v393
          %v401 = vmul.f32 %v223, %v395
          %v402 = vmul.f32 %v224, %v397
          %v403 = vmul.f32 %v225, %v399
          %v404 = vadd.f32 %v400, %v401
          %v405 = vadd.f32 %v404, %v402
          %v406 = vadd.f32 %v405, %v403
          %407 = vrot.lane.b32.xlu0 %v260, 5
          %v408 = vpop.permute.xlu0 %407
          %v409 = vmul.f32 %v238, %v408
          %v410 = vstv %s391
          %vm411 = vcmp.ge.s32.totalorder %v249, %v410
          %v412 = vsel %vm411, 1, 0
          %vm413 = vcmp.eq.s32.totalorder %v412, 1
          %v414 = vsel %vm413, %v409, 0.0
          %v415 = vmul.f32 %v406, %v414
          %s416 = smul.u32 %s391, 8
          %s417 = scalar_lea.vmem %s221, %s416 [#allocation7]
          %418 = vst [vmem:[%s417] sm:$0xff] %v415
          %s419 = sadd.s32 %s261, 6
          %420 = vrot.lane.b32.xlu0 %v256, 6
          %v421 = vpop.permute.xlu0 %420
          %422 = vrot.lane.b32.xlu0 %v257, 6
          %v423 = vpop.permute.xlu0 %422
          %424 = vrot.lane.b32.xlu0 %v258, 6
          %v425 = vpop.permute.xlu0 %424
          %426 = vrot.lane.b32.xlu0 %v259, 6
          %v427 = vpop.permute.xlu0 %426
          %v428 = vmul.f32 %v222, %v421
          %v429 = vmul.f32 %v223, %v423
          %v430 = vmul.f32 %v224, %v425
          %v431 = vmul.f32 %v225, %v427
          %v432 = vadd.f32 %v428, %v429
          %v433 = vadd.f32 %v432, %v430
          %v434 = vadd.f32 %v433, %v431
          %435 = vrot.lane.b32.xlu0 %v260, 6
          %v436 = vpop.permute.xlu0 %435
          %v437 = vmul.f32 %v238, %v436
          %v438 = vstv %s419
          %vm439 = vcmp.ge.s32.totalorder %v249, %v438
          %v440 = vsel %vm439, 1, 0
          %vm441 = vcmp.eq.s32.totalorder %v440, 1
          %v442 = vsel %vm441, %v437, 0.0
          %v443 = vmul.f32 %v434, %v442
          %s444 = smul.u32 %s419, 8
          %s445 = scalar_lea.vmem %s221, %s444 [#allocation7]
          %446 = vst [vmem:[%s445] sm:$0xff] %v443
          %s447 = sadd.s32 %s261, 7
          %448 = vrot.lane.b32.xlu0 %v256, 7
          %v449 = vpop.permute.xlu0 %448
          %450 = vrot.lane.b32.xlu0 %v257, 7
          %v451 = vpop.permute.xlu0 %450
          %452 = vrot.lane.b32.xlu0 %v258, 7
          %v453 = vpop.permute.xlu0 %452
          %454 = vrot.lane.b32.xlu0 %v259, 7
          %v455 = vpop.permute.xlu0 %454
          %v456 = vmul.f32 %v222, %v449
          %v457 = vmul.f32 %v223, %v451
          %v458 = vmul.f32 %v224, %v453
          %v459 = vmul.f32 %v225, %v455
          %v460 = vadd.f32 %v456, %v457
          %v461 = vadd.f32 %v460, %v458
          %v462 = vadd.f32 %v461, %v459
          %463 = vrot.lane.b32.xlu0 %v260, 7
          %v464 = vpop.permute.xlu0 %463
          %v465 = vmul.f32 %v238, %v464
          %v466 = vstv %s447
          %vm467 = vcmp.ge.s32.totalorder %v249, %v466
          %v468 = vsel %vm467, 1, 0
          %vm469 = vcmp.eq.s32.totalorder %v468, 1
          %v470 = vsel %vm469, %v465, 0.0
          %v471 = vmul.f32 %v462, %v470
          %s472 = smul.u32 %s447, 8
          %s473 = scalar_lea.vmem %s221, %s472 [#allocation7]
          %474 = vst [vmem:[%s473] sm:$0xff] %v471
          %475 = vrot.lane.b32.xlu0 %v256, 8
          %v476 = vpop.permute.xlu0 %475
          %477 = vrot.lane.b32.xlu0 %v257, 8
          %v478 = vpop.permute.xlu0 %477
          %479 = vrot.lane.b32.xlu0 %v258, 8
          %v480 = vpop.permute.xlu0 %479
          %481 = vrot.lane.b32.xlu0 %v259, 8
          %v482 = vpop.permute.xlu0 %481
          %483 = vrot.lane.b32.xlu0 %v260, 8
          %v484 = vpop.permute.xlu0 %483
        $region41: #{tpu_custom_call.1} parent=27 // loop_footer
          %s255 = sadd.s32 1, %s251
        $region42: #{tpu_custom_call.1} parent=27 // loop_footer_branch
          %250 = sbr.rel target = $region38
        $region43: #{tpu_custom_call.1} parent=27 // loop_exit
          _
        %s485 = sand.u32 %s100, 1
        %s486 = scalar_lea.sflag [#allocation4], %s485
        %s487 = sand.u32 %s100, 1
        %s488 = smul.addr %s487, 128
        %s489 = scalar_lea.vmem [#allocation7], %s488
        // Predicated region
        $region44: #{tpu_custom_call.1} parent=27 // pred_check
          %p490 = pneg %p110
        $region45: #{tpu_custom_call.1} parent=27 // pred_check_branch
          %492 = sbr.rel (%p490) target = $region47
        $region46: #{tpu_custom_call.1} parent=27 // pred_region
          %s494 = ssub.s32 2048, 2048
          %495 = vsyncadd %s486, %s494
          %s496 = smul.addr %s26, 16
          %s497 = sadd.s32 %s27, %s496
          %s498 = smul.addr %s497, 128
          %s499 = scalar_lea.hbm %s2, %s498
          %s500 = sshll.u32 %s489, 4
          %s501 = int_to_ptr.vmem [resolvable:$true] %s500
          %506 = dma.vmem_to_hbm [thread:$0]  %s501, 2048, %s499, %s486, 128, 128, 8
        $region47: #{tpu_custom_call.1} parent=27 // pred_fallthru
          _
      $region28: #{tpu_custom_call.1} parent=5 // pred_fallthru
        _
      %p507 = scmp.le.s32.totalorder 2, %s17
      // Predicated region
      $region48: #{tpu_custom_call.1} parent=5 // pred_check
        %p508 = pneg %p507
      $region49: #{tpu_custom_call.1} parent=5 // pred_check_branch
        %510 = sbr.rel (%p508) target = $region51
      $region50: #{tpu_custom_call.1} parent=5 // pred_region
        %s511 = ssub.s32 %s17, 2
        // Predicated region
        $region52: #{tpu_custom_call.1} parent=50 // pred_check
          %p512 = pneg %p116
        $region53: #{tpu_custom_call.1} parent=50 // pred_check_branch
          %514 = sbr.rel (%p512) target = $region55
        $region54: #{tpu_custom_call.1} parent=50 // pred_region
          %s515 = sand.u32 %s101, 1
          %s516 = scalar_lea.sflag [#allocation4], %s515
          %s517 = sand.u32 %s101, 1
          %s518 = smul.addr %s517, 128
          %s519 = scalar_lea.vmem [#allocation7], %s518
          %520 = dma.done %s516, 2048
        $region55: #{tpu_custom_call.1} parent=50 // pred_fallthru
          _
      $region51: #{tpu_custom_call.1} parent=5 // pred_fallthru
        _
    $region6: #{tpu_custom_call.1} parent=1 // loop_footer
      %s21 = sadd.s32 1, %s17
    $region7: #{tpu_custom_call.1} parent=1 // loop_footer_branch
      %16 = sbr.rel target = $region3
    $region8: #{tpu_custom_call.1} parent=1 // loop_exit
      _
    %521 = vsyncpa [#allocation3], 1
    %s522 = scalar_lea.sflag [#allocation3], 1
    %523 = vsyncpa %s522, 1
    %524 = vsyncpa [#allocation6], 1
    %s525 = scalar_lea.sflag [#allocation6], 1
    %526 = vsyncpa %s525, 1
    %527 = vsyncpa [#allocation4], 1
    %s528 = scalar_lea.sflag [#allocation4], 1
    %529 = vsyncpa %s528, 1

</llo_original>
